<compile_context>
chip_gen: v5e
topology: v5e:2x2
jax: 0.10.0
libtpu: 0.0.40
codegen_flags: <defaults>
</compile_context>

<pallas_src>
import numpy as np
import jax
import jax.numpy as jnp
from jax import lax
from jax.experimental import pallas as pl
from jax.experimental.pallas import tpu as pltpu

# ----------------------------- configuration ---------------------------------
V = 512              # number of mesh vertices (real SMPL: 6890)
NUM_JOINTS = 24      # SMPL kinematic joints
NUM_BETAS = 10
NUM_POSE_FEAT = 207  # 23 * 9
NUM_POSE_PAD = 208   # padded to a multiple of 8
NJ = 19              # cocoplus regressed joints
JPAD = 128           # lane-dense padding for the regressed-joint axis


def _detect_nsplit():
    # Only v7x has 2 TensorCores per chip; elsewhere a split is just a serial loop.
    try:
        kind = jax.devices()[0].device_kind.lower()
    except Exception:
        return 1
    return 2 if ("v7" in kind or "7x" in kind) else 1


NSPLIT = _detect_nsplit()
VH = V // NSPLIT     # vertices per split (multiple of 128)
F3 = 3 * VH          # lane-flattened (coordinate-major) feature width per split

# SMPL kinematic tree parents (parents[0] is the unused root entry).
PARENTS = np.array([-1, 0, 0, 0, 1, 2, 3, 4, 5, 6, 7, 8, 9, 9, 9,
                    12, 13, 14, 16, 17, 18, 19, 20, 21], dtype=np.int32)


def _round_up(x, m):
    return ((x + m - 1) // m) * m


# ----------------------------- plain-JAX glue ---------------------------------
def quat2mat(quat):
    norm_quat = quat / jnp.linalg.norm(quat, axis=1, keepdims=True)
    w, x, y, z = (norm_quat[:, 0], norm_quat[:, 1],
                  norm_quat[:, 2], norm_quat[:, 3])
    w2, x2, y2, z2 = w * w, x * x, y * y, z * z
    wx, wy, wz = w * x, w * y, w * z
    xy, xz, yz = x * y, x * z, y * z
    rot = jnp.stack(
        [w2 + x2 - y2 - z2, 2 * xy - 2 * wz, 2 * wy + 2 * xz,
         2 * wz + 2 * xy, w2 - x2 + y2 - z2, 2 * yz - 2 * wx,
         2 * xz - 2 * wy, 2 * wx + 2 * yz, w2 - x2 - y2 + z2], axis=1)
    return rot.reshape(-1, 3, 3)


def batch_rodrigues(theta):
    # theta: (N, 3)
    angle = jnp.linalg.norm(theta + 1e-8, axis=1, keepdims=True)
    normalized = theta / angle
    half = angle * 0.5
    v_cos = jnp.cos(half)
    v_sin = jnp.sin(half)
    quat = jnp.concatenate([v_cos, v_sin * normalized], axis=1)
    return quat2mat(quat)


def batch_global_rigid_transformation(Rs, Js, parent, rotate_base=True):
    """Kinematic chain via lax.scan (23 steps) — same math as the torch version."""
    B = Rs.shape[0]
    N = parent.shape[0]
    if rotate_base:
        rot_x = jnp.array([[1., 0., 0.], [0., -1., 0.], [0., 0., -1.]],
                          dtype=jnp.float32)
        root_rotation = jnp.matmul(Rs[:, 0], rot_x)
    else:
        root_rotation = Rs[:, 0]
    Js = Js[..., None]                                                # (B, N, 3, 1)

    def make_A(R, t):                                                 # (B,3,3),(B,3,1)
        R_homo = jnp.pad(R, ((0, 0), (0, 1), (0, 0)))                 # (B,4,3)
        t_homo = jnp.concatenate(
            [t, jnp.ones((B, 1, 1), jnp.float32)], axis=1)            # (B,4,1)
        return jnp.concatenate([R_homo, t_homo], axis=2)              # (B,4,4)

    A0 = make_A(root_rotation, Js[:, 0])                              # (B,4,4)

    parent_np = np.asarray(parent)
    j_rel = Js[:, 1:] - Js[:, parent_np[1:]]                          # (B,N-1,3,1)
    R_homo = jnp.pad(Rs[:, 1:], ((0, 0), (0, 0), (0, 1), (0, 0)))     # (B,N-1,4,3)
    t_homo = jnp.concatenate(
        [j_rel, jnp.ones((B, N - 1, 1, 1), jnp.float32)], axis=2)     # (B,N-1,4,1)
    A_local = jnp.concatenate([R_homo, t_homo], axis=3)               # (B,N-1,4,4)
    A_local = jnp.transpose(A_local, (1, 0, 2, 3))                    # (N-1,B,4,4)

    results0 = jnp.zeros((N, B, 4, 4), jnp.float32).at[0].set(A0)
    idx = jnp.arange(1, N, dtype=jnp.int32)
    par = jnp.asarray(parent_np[1:], jnp.int32)

    def step(results, x):
        i, p, A_loc = x
        A_glob = jnp.matmul(results[p], A_loc)                        # (B,4,4)
        results = lax.dynamic_update_slice(results, A_glob[None], (i, 0, 0, 0))
        return results, None

    results, _ = lax.scan(step, results0, (idx, par, A_local))
    results = jnp.transpose(results, (1, 0, 2, 3))                    # (B,N,4,4)

    new_J = results[:, :, :3, 3]
    Js_w0 = jnp.concatenate(
        [Js, jnp.zeros((B, N, 1, 1), jnp.float32)], axis=2)           # (B,N,4,1)
    init_bone = jnp.matmul(results, Js_w0)                            # (B,N,4,1)
    init_bone = jnp.pad(init_bone, ((0, 0), (0, 0), (0, 0), (3, 0)))  # (B,N,4,4)
    A = results - init_bone
    return new_J, A


# ----------------------------- Pallas kernels ---------------------------------
def _blend_call(BP):
    """v_shaped = beta@shapedirs + v_template ; v_posed = v_shaped + pf@posedirs ;
       partial (per vertex split) J regression. One bf16 matmul per term, M = BP."""

    def kernel(beta_ref, pf_ref, vt_ref, sd_ref, pd_ref, jreg_ref,
               vposed_ref, Jp_ref):
        beta_bf = beta_ref[...].astype(jnp.bfloat16)                  # (BP, 10)
        pf_bf = pf_ref[...].astype(jnp.bfloat16)                      # (BP, 208)
        v_shaped = jnp.dot(beta_bf, sd_ref[0],
                           preferred_element_type=jnp.float32) + vt_ref[0]  # (BP, 3VH)
        v_posed = v_shaped + jnp.dot(pf_bf, pd_ref[0],
                                     preferred_element_type=jnp.float32)
        vposed_ref[0] = v_posed                                       # lane-dense
        # Coordinate-major row stack (row = c*BP + b) -> single K=VH matmul,
        # lane-dense (3BP, 128) output (joint axis zero-padded to 128).
        vs = v_shaped.astype(jnp.bfloat16)
        vs_stack = jnp.concatenate([vs[:, 0 * VH:1 * VH],
                                    vs[:, 1 * VH:2 * VH],
                                    vs[:, 2 * VH:3 * VH]], axis=0)    # (3BP, VH)
        Jp_ref[0] = jnp.dot(vs_stack, jreg_ref[0],
                            preferred_element_type=jnp.float32)       # (3BP, 128)

    return pl.pallas_call(
        kernel,
        out_shape=(jax.ShapeDtypeStruct((NSPLIT, BP, F3), jnp.float32),
                   jax.ShapeDtypeStruct((NSPLIT, 3 * BP, JPAD), jnp.float32)),
        grid_spec=pltpu.PrefetchScalarGridSpec(
            num_scalar_prefetch=0,
            grid=(NSPLIT,),
            in_specs=[
                pl.BlockSpec((BP, NUM_BETAS), lambda h: (0, 0)),
                pl.BlockSpec((BP, NUM_POSE_PAD), lambda h: (0, 0)),
                pl.BlockSpec((1, 1, F3), lambda h: (h, 0, 0)),
                pl.BlockSpec((1, NUM_BETAS, F3), lambda h: (h, 0, 0)),
                pl.BlockSpec((1, NUM_POSE_PAD, F3), lambda h: (h, 0, 0)),
                pl.BlockSpec((1, VH, JPAD), lambda h: (h, 0, 0)),
            ],
            out_specs=(
                pl.BlockSpec((1, BP, F3), lambda h: (h, 0, 0)),
                pl.BlockSpec((1, 3 * BP, JPAD), lambda h: (h, 0, 0)),
            ),
        ),
        compiler_params=pltpu.CompilerParams(
            dimension_semantics=("parallel",)),
    )


def _skin_call(BP):
    """Tt = A_k @ W with A_k rows grouped by affine column:
       row = c2*(3*BP) + c*BP + b  (c2 = 3 is the translation block, trans baked in).
       Per-vertex affine transform = 3 block FMAs + 1 add on (3BP, VH) tiles, then a
       lane-dense partial cocoplus joint regression."""

    def kernel(A_ref, w_ref, vp_ref, jreg_ref, verts_ref, jp_ref):
        Tt = jnp.dot(A_ref[...].astype(jnp.bfloat16), w_ref[0],
                     preferred_element_type=jnp.float32)              # (12BP, VH)
        vp = vp_ref[0]                                                # (BP, 3VH)
        TB = 3 * BP
        acc = Tt[3 * TB:4 * TB, :]                                    # translation block
        for c2 in range(3):                                           # static unroll (3)
            vblk = vp[:, c2 * VH:(c2 + 1) * VH]                       # (BP, VH)
            vrep = jnp.concatenate([vblk, vblk, vblk], axis=0)        # (3BP, VH)
            acc = acc + Tt[c2 * TB:(c2 + 1) * TB, :] * vrep
        verts_ref[0] = acc                                            # row = c*BP + b
        jp_ref[0] = jnp.dot(acc.astype(jnp.bfloat16), jreg_ref[0],
                            preferred_element_type=jnp.float32)       # (3BP, 128)

    return pl.pallas_call(
        kernel,
        out_shape=(jax.ShapeDtypeStruct((NSPLIT, 3 * BP, VH), jnp.float32),
                   jax.ShapeDtypeStruct((NSPLIT, 3 * BP, JPAD), jnp.float32)),
        grid_spec=pltpu.PrefetchScalarGridSpec(
            num_scalar_prefetch=0,
            grid=(NSPLIT,),
            in_specs=[
                pl.BlockSpec((12 * BP, NUM_JOINTS), lambda h: (0, 0)),
                pl.BlockSpec((1, NUM_JOINTS, VH), lambda h: (h, 0, 0)),
                pl.BlockSpec((1, BP, F3), lambda h: (h, 0, 0)),
                pl.BlockSpec((1, VH, JPAD), lambda h: (h, 0, 0)),
            ],
            out_specs=(
                pl.BlockSpec((1, 3 * BP, VH), lambda h: (h, 0, 0)),
                pl.BlockSpec((1, 3 * BP, JPAD), lambda h: (h, 0, 0)),
            ),
        ),
        compiler_params=pltpu.CompilerParams(
            dimension_semantics=("parallel",)),
    )


# ----------------------------- SMPL forward -----------------------------------
def smpl_forward(params, beta, theta, trans, get_skin=False):
    B = beta.shape[0]
    BP = _round_up(max(B, 8), 8)                 # batch padded to a sublane multiple

    Rs = batch_rodrigues(theta.reshape(-1, 3)).reshape(B, NUM_JOINTS, 3, 3)
    # Rs[:, 1:].sub(1.0, e3)  ==  Rs[:, 1:] - I
    pose_feature = (Rs[:, 1:, :, :] - jnp.eye(3, dtype=jnp.float32)
                    ).reshape(B, NUM_POSE_FEAT)

    beta_pad = jnp.pad(beta.astype(jnp.float32), ((0, BP - B), (0, 0)))
    pf_pad = jnp.pad(pose_feature,
                     ((0, BP - B), (0, NUM_POSE_PAD - NUM_POSE_FEAT)))

    v_posed_k, Jp = _blend_call(BP)(
        beta_pad, pf_pad,
        params["v_template_k"], params["shapedirs_k"], params["posedirs_k"],
        params["J_regressor_k"])

    # Jp: (NSPLIT, 3BP, 128), row = c*BP + b  ->  J: (B, 24, 3)
    J_all = jnp.sum(Jp, axis=0)[:, :NUM_JOINTS]
    J = J_all.reshape(3, BP, NUM_JOINTS)[:, :B].transpose(1, 2, 0)

    _J_transformed, A = batch_global_rigid_transformation(
        Rs, J, PARENTS, rotate_base=True)

    # Bake trans into the translation column (weights sum to 1 per vertex), then
    # lay rows out as c2*(3BP) + c*BP + b so Tt splits into 4 aligned blocks.
    A3 = A[:, :, :3, :]                                               # (B,24,3,4)
    A3 = A3.at[:, :, :, 3].add(trans.reshape(B, 1, 3).astype(jnp.float32))
    A3 = jnp.pad(A3, ((0, BP - B), (0, 0), (0, 0), (0, 0)))           # (BP,24,3,4)
    A_k = jnp.transpose(A3, (3, 2, 0, 1)).reshape(12 * BP, NUM_JOINTS)

    verts_k, jp2 = _skin_call(BP)(
        A_k, params["weights_k"], v_posed_k, params["joint_regressor_k"])

    # verts_k: (NSPLIT, 3BP, VH), row = c*BP + b, vertex v = h*VH + vl
    verts_rows = jnp.transpose(verts_k, (1, 0, 2)).reshape(3 * BP, V)
    verts = verts_rows.reshape(3, BP, V)[:, :B].transpose(1, 2, 0)    # (B, V, 3)

    joints_all = jnp.sum(jp2, axis=0)[:, :NJ]                         # (3BP, NJ)
    joints = joints_all.reshape(3, BP, NJ)[:, :B].transpose(1, 2, 0)  # (B, NJ, 3)
    if get_skin:
        return verts, joints, Rs
    return joints


# ----------------------------- parameter preparation ---------------------------
def prepare_params(model):
    """Re-layout PyTorch-convention buffers for the kernels: coordinate-major lanes,
       NSPLIT-way vertex split, bf16 streaming operands, lane-dense (128-padded)
       joint-regressor columns."""
    vt = model["v_template"].reshape(NSPLIT, VH, 3).transpose(0, 2, 1) \
        .reshape(NSPLIT, 1, F3)
    sd = model["shapedirs"].reshape(NSPLIT, VH, 3, NUM_BETAS) \
        .transpose(0, 3, 2, 1).reshape(NSPLIT, NUM_BETAS, F3)
    pd = jnp.pad(model["posedirs"],
                 ((0, 0), (0, 0), (0, NUM_POSE_PAD - NUM_POSE_FEAT)))
    pd = pd.reshape(NSPLIT, VH, 3, NUM_POSE_PAD) \
        .transpose(0, 3, 2, 1).reshape(NSPLIT, NUM_POSE_PAD, F3)
    jreg = jnp.pad(model["J_regressor"], ((0, 0), (0, JPAD - NUM_JOINTS))) \
        .reshape(NSPLIT, VH, JPAD)
    creg = jnp.pad(model["joint_regressor"], ((0, 0), (0, JPAD - NJ))) \
        .reshape(NSPLIT, VH, JPAD)
    w = model["weights"].reshape(NSPLIT, VH, NUM_JOINTS).transpose(0, 2, 1)
    return dict(
        v_template_k=vt.astype(jnp.float32),
        shapedirs_k=sd.astype(jnp.bfloat16),
        posedirs_k=pd.astype(jnp.bfloat16),
        J_regressor_k=jreg.astype(jnp.bfloat16),
        joint_regressor_k=creg.astype(jnp.bfloat16),
        weights_k=w.astype(jnp.bfloat16),
    )


# ----------------------------- reference (pure JAX, mirrors torch) -------------
def smpl_reference(p, beta, theta, trans):
    B = beta.shape[0]
    shapedirs2d = p["shapedirs"].reshape(V * 3, NUM_BETAS).T
    posedirs2d = p["posedirs"].reshape(V * 3, NUM_POSE_FEAT).T
    v_shaped = (beta @ shapedirs2d).reshape(B, V, 3) + p["v_template"]
    J = jnp.stack([v_shaped[:, :, c] @ p["J_regressor"] for c in range(3)], axis=2)
    Rs = batch_rodrigues(theta.reshape(-1, 3)).reshape(B, NUM_JOINTS, 3, 3)
    pose_feature = (Rs[:, 1:, :, :] - jnp.eye(3, dtype=jnp.float32)
                    ).reshape(B, NUM_POSE_FEAT)
    v_posed = (pose_feature @ posedirs2d).reshape(B, V, 3) + v_shaped
    _, A = batch_global_rigid_transformation(Rs, J, PARENTS, rotate_base=True)
    W = jnp.broadcast_to(p["weights"], (B, V, NUM_JOINTS))
    T = jnp.matmul(W, A.reshape(B, NUM_JOINTS, 16)).reshape(B, V, 4, 4)
    v_posed_homo = jnp.concatenate(
        [v_posed, jnp.ones((B, V, 1), jnp.float32)], axis=2)
    v_homo = jnp.matmul(T, v_posed_homo[..., None])
    verts = v_homo[:, :, :3, 0] + trans.reshape(B, 1, 3)
    joints = jnp.stack([verts[:, :, c] @ p["joint_regressor"] for c in range(3)],
                       axis=2)
    return verts, joints, Rs


# ----------------------------- deterministic parameters ------------------------
def init_model_params(key):
    ks = jax.random.split(key, 6)
    v_template = jax.random.normal(ks[0], (V, 3), jnp.float32) * 0.5
    shapedirs = jax.random.normal(ks[1], (V, 3, NUM_BETAS), jnp.float32) * 0.03
    posedirs = jax.random.normal(ks[2], (V, 3, NUM_POSE_FEAT), jnp.float32) * 0.01
    jr = jax.random.uniform(ks[3], (V, NUM_JOINTS), jnp.float32)
    J_regressor = jr / jnp.sum(jr, axis=0, keepdims=True)
    cr = jax.random.uniform(ks[4], (V, NJ), jnp.float32)
    joint_regressor = cr / jnp.sum(cr, axis=0, keepdims=True)
    w = jax.random.uniform(ks[5], (V, NUM_JOINTS), jnp.float32)
    weights = w / jnp.sum(w, axis=1, keepdims=True)
    return dict(v_template=v_template, shapedirs=shapedirs, posedirs=posedirs,
                J_regressor=J_regressor, joint_regressor=joint_regressor,
                weights=weights)


if __name__ == "__main__":
    key = jax.random.PRNGKey(0)
    kp, kb, kt, ktr = jax.random.split(key, 4)

    model = init_model_params(kp)
    params = prepare_params(model)

    B = 2
    beta = jax.random.normal(kb, (B, NUM_BETAS), jnp.float32) * 0.3
    theta = jax.random.normal(kt, (B, NUM_JOINTS * 3), jnp.float32) * 0.3
    trans = jax.random.normal(ktr, (B, 3), jnp.float32) * 0.1

    fwd = jax.jit(lambda b, t, tr: smpl_forward(params, b, t, tr, get_skin=True))
    verts, joints, Rs = fwd(beta, theta, trans)
    for x in (verts, joints, Rs):
        jax.block_until_ready(x)

    ref = jax.jit(lambda b, t, tr: smpl_reference(model, b, t, tr))
    verts_ref, joints_ref, Rs_ref = ref(beta, theta, trans)
    for x in (verts_ref, joints_ref, Rs_ref):
        jax.block_until_ready(x)

    np.testing.assert_allclose(np.asarray(Rs), np.asarray(Rs_ref),
                               atol=1e-4, rtol=1e-4)
    np.testing.assert_allclose(np.asarray(verts), np.asarray(verts_ref),
                               atol=2e-2, rtol=2e-2)
    np.testing.assert_allclose(np.asarray(joints), np.asarray(joints_ref),
                               atol=2e-2, rtol=2e-2)
    assert verts.shape == (B, V, 3) and joints.shape == (B, NJ, 3) \
        and Rs.shape == (B, NUM_JOINTS, 3, 3)
    print("KERNEL_OK")
</pallas_src>

<mosaic_0001>
module attributes {stable_mosaic.version = 11 : i64} {
  func.func @kernel(%arg0: i32, %arg1: memref<8x10xf32, #tpu.memory_space<vmem>>, %arg2: memref<8x208xf32, #tpu.memory_space<vmem>>, %arg3: memref<1x1x1536xf32, #tpu.memory_space<vmem>>, %arg4: memref<1x10x1536xbf16, #tpu.memory_space<vmem>>, %arg5: memref<1x208x1536xbf16, #tpu.memory_space<vmem>>, %arg6: memref<1x512x128xbf16, #tpu.memory_space<vmem>>, %arg7: memref<1x8x1536xf32, #tpu.memory_space<vmem>>, %arg8: memref<1x24x128xf32, #tpu.memory_space<vmem>>) attributes {dimension_semantics = [#tpu.dimension_semantics<parallel>], iteration_bounds = array<i64: 1>, scalar_prefetch = 0 : i64, scratch_operands = 0 : i64, tpu.core_type = #tpu.core_type<tc>, window_params = [{pipeline_mode = #tpu.pipeline_mode<synchronous>, transform_indices = @transform_0, window_bounds = array<i64: 8, 10>}, {pipeline_mode = #tpu.pipeline_mode<synchronous>, transform_indices = @transform_1, window_bounds = array<i64: 8, 208>}, {transform_indices = @transform_2, window_bounds = array<i64: 1, 1, 1536>}, {transform_indices = @transform_3, window_bounds = array<i64: 1, 10, 1536>}, {transform_indices = @transform_4, window_bounds = array<i64: 1, 208, 1536>}, {transform_indices = @transform_5, window_bounds = array<i64: 1, 512, 128>}, {transform_indices = @transform_6, window_bounds = array<i64: 1, 8, 1536>}, {transform_indices = @transform_7, window_bounds = array<i64: 1, 24, 128>}]} {
    %c0 = arith.constant 0 : index
    %c0_0 = arith.constant 0 : index
    %0 = vector.load %arg1[%c0, %c0_0] : memref<8x10xf32, #tpu.memory_space<vmem>>, vector<8x10xf32>
    %1 = arith.truncf %0 : vector<8x10xf32> to vector<8x10xbf16>
    %c0_1 = arith.constant 0 : index
    %c0_2 = arith.constant 0 : index
    %2 = vector.load %arg2[%c0_1, %c0_2] : memref<8x208xf32, #tpu.memory_space<vmem>>, vector<8x208xf32>
    %3 = arith.truncf %2 : vector<8x208xf32> to vector<8x208xbf16>
    %c0_3 = arith.constant 0 : index
    %c0_4 = arith.constant 0 : index
    %c0_5 = arith.constant 0 : index
    %4 = vector.load %arg4[%c0_3, %c0_4, %c0_5] : memref<1x10x1536xbf16, #tpu.memory_space<vmem>>, vector<1x10x1536xbf16>
    %5 = vector.shape_cast %4 : vector<1x10x1536xbf16> to vector<10x1536xbf16>
    %cst = arith.constant dense<0.000000e+00> : vector<8x1536xf32>
    %6 = tpu.matmul %1, %5, %cst {dimension_numbers = #tpu.dot_dimension_numbers<[1], [0], [0], [1], [0, 0, 1, 1], [], []>} : vector<8x10xbf16>, vector<10x1536xbf16>, vector<8x1536xf32> -> vector<8x1536xf32>
    %c0_6 = arith.constant 0 : index
    %c0_7 = arith.constant 0 : index
    %c0_8 = arith.constant 0 : index
    %7 = vector.load %arg3[%c0_6, %c0_7, %c0_8] : memref<1x1x1536xf32, #tpu.memory_space<vmem>>, vector<1x1x1536xf32>
    %8 = vector.shape_cast %7 : vector<1x1x1536xf32> to vector<1x1536xf32>
    %9 = vector.broadcast %8 : vector<1x1536xf32> to vector<8x1536xf32>
    %10 = arith.addf %6, %9 : vector<8x1536xf32>
    %c0_9 = arith.constant 0 : index
    %c0_10 = arith.constant 0 : index
    %c0_11 = arith.constant 0 : index
    %11 = vector.load %arg5[%c0_9, %c0_10, %c0_11] : memref<1x208x1536xbf16, #tpu.memory_space<vmem>>, vector<1x208x1536xbf16>
    %12 = vector.shape_cast %11 : vector<1x208x1536xbf16> to vector<208x1536xbf16>
    %cst_12 = arith.constant dense<0.000000e+00> : vector<8x1536xf32>
    %13 = tpu.matmul %3, %12, %cst_12 {dimension_numbers = #tpu.dot_dimension_numbers<[1], [0], [0], [1], [0, 0, 1, 1], [], []>} : vector<8x208xbf16>, vector<208x1536xbf16>, vector<8x1536xf32> -> vector<8x1536xf32>
    %14 = arith.addf %10, %13 : vector<8x1536xf32>
    %c0_13 = arith.constant 0 : index
    %c0_14 = arith.constant 0 : index
    %c0_15 = arith.constant 0 : index
    %15 = vector.load %arg7[%c0_13, %c0_14, %c0_15] : memref<1x8x1536xf32, #tpu.memory_space<vmem>>, vector<1x8x1536xf32>
    %16 = vector.shape_cast %15 : vector<1x8x1536xf32> to vector<8x1536xf32>
    %17 = vector.shape_cast %14 : vector<8x1536xf32> to vector<1x8x1536xf32>
    tpu.vector_store %arg7[%c0_13, %c0_14, %c0_15], %17 {strides = array<i32>} : memref<1x8x1536xf32, #tpu.memory_space<vmem>>, vector<1x8x1536xf32>,
    %18 = arith.truncf %10 : vector<8x1536xf32> to vector<8x1536xbf16>
    %19 = vector.extract_strided_slice %18 {offsets = [0, 0], sizes = [8, 512], strides = [1, 1]} : vector<8x1536xbf16> to vector<8x512xbf16>
    %20 = vector.extract_strided_slice %18 {offsets = [0, 512], sizes = [8, 512], strides = [1, 1]} : vector<8x1536xbf16> to vector<8x512xbf16>
    %21 = vector.extract_strided_slice %18 {offsets = [0, 1024], sizes = [8, 512], strides = [1, 1]} : vector<8x1536xbf16> to vector<8x512xbf16>
    %22 = tpu.concatenate %19, %20, %21 in 0 : vector<8x512xbf16>, vector<8x512xbf16>, vector<8x512xbf16> -> vector<24x512xbf16>
    %c0_16 = arith.constant 0 : index
    %c0_17 = arith.constant 0 : index
    %c0_18 = arith.constant 0 : index
    %23 = vector.load %arg6[%c0_16, %c0_17, %c0_18] : memref<1x512x128xbf16, #tpu.memory_space<vmem>>, vector<1x512x128xbf16>
    %24 = vector.shape_cast %23 : vector<1x512x128xbf16> to vector<512x128xbf16>
    %cst_19 = arith.constant dense<0.000000e+00> : vector<24x128xf32>
    %25 = tpu.matmul %22, %24, %cst_19 {dimension_numbers = #tpu.dot_dimension_numbers<[1], [0], [0], [1], [0, 0, 1, 1], [], []>} : vector<24x512xbf16>, vector<512x128xbf16>, vector<24x128xf32> -> vector<24x128xf32>
    %c0_20 = arith.constant 0 : index
    %c0_21 = arith.constant 0 : index
    %c0_22 = arith.constant 0 : index
    %26 = vector.load %arg8[%c0_20, %c0_21, %c0_22] : memref<1x24x128xf32, #tpu.memory_space<vmem>>, vector<1x24x128xf32>
    %27 = vector.shape_cast %26 : vector<1x24x128xf32> to vector<24x128xf32>
    %28 = vector.shape_cast %25 : vector<24x128xf32> to vector<1x24x128xf32>
    tpu.vector_store %arg8[%c0_20, %c0_21, %c0_22], %28 {strides = array<i32>} : memref<1x24x128xf32, #tpu.memory_space<vmem>>, vector<1x24x128xf32>,
    return
  }
  func.func @transform_0(%arg0: i32) -> (i32, i32) {
    %c0_i32 = arith.constant 0 : i32
    %c0_i32_0 = arith.constant 0 : i32
    %c0_i32_1 = arith.constant 0 : i32
    return %c0_i32, %c0_i32_0 : i32, i32
  }
  func.func @transform_1(%arg0: i32) -> (i32, i32) {
    %c0_i32 = arith.constant 0 : i32
    %c0_i32_0 = arith.constant 0 : i32
    %c0_i32_1 = arith.constant 0 : i32
    return %c0_i32, %c0_i32_0 : i32, i32
  }
  func.func @transform_2(%arg0: i32) -> (i32, i32, i32) {
    %c0_i32 = arith.constant 0 : i32
    %c0_i32_0 = arith.constant 0 : i32
    %c0_i32_1 = arith.constant 0 : i32
    return %arg0, %c0_i32, %c0_i32_0 : i32, i32, i32
  }
  func.func @transform_3(%arg0: i32) -> (i32, i32, i32) {
    %c0_i32 = arith.constant 0 : i32
    %c0_i32_0 = arith.constant 0 : i32
    %c0_i32_1 = arith.constant 0 : i32
    return %arg0, %c0_i32, %c0_i32_0 : i32, i32, i32
  }
  func.func @transform_4(%arg0: i32) -> (i32, i32, i32) {
    %c0_i32 = arith.constant 0 : i32
    %c0_i32_0 = arith.constant 0 : i32
    %c0_i32_1 = arith.constant 0 : i32
    return %arg0, %c0_i32, %c0_i32_0 : i32, i32, i32
  }
  func.func @transform_5(%arg0: i32) -> (i32, i32, i32) {
    %c0_i32 = arith.constant 0 : i32
    %c0_i32_0 = arith.constant 0 : i32
    %c0_i32_1 = arith.constant 0 : i32
    return %arg0, %c0_i32, %c0_i32_0 : i32, i32, i32
  }
  func.func @transform_6(%arg0: i32) -> (i32, i32, i32) {
    %c0_i32 = arith.constant 0 : i32
    %c0_i32_0 = arith.constant 0 : i32
    %c0_i32_1 = arith.constant 0 : i32
    return %arg0, %c0_i32, %c0_i32_0 : i32, i32, i32
  }
  func.func @transform_7(%arg0: i32) -> (i32, i32, i32) {
    %c0_i32 = arith.constant 0 : i32
    %c0_i32_0 = arith.constant 0 : i32
    %c0_i32_1 = arith.constant 0 : i32
    return %arg0, %c0_i32, %c0_i32_0 : i32, i32, i32
  }
}

module attributes {stable_mosaic.version = 11 : i64} {
  func.func @kernel(%arg0: i32, %arg1: memref<96x24xf32, #tpu.memory_space<vmem>>, %arg2: memref<1x24x512xbf16, #tpu.memory_space<vmem>>, %arg3: memref<1x8x1536xf32, #tpu.memory_space<vmem>>, %arg4: memref<1x512x128xbf16, #tpu.memory_space<vmem>>, %arg5: memref<1x24x512xf32, #tpu.memory_space<vmem>>, %arg6: memref<1x24x128xf32, #tpu.memory_space<vmem>>) attributes {dimension_semantics = [#tpu.dimension_semantics<parallel>], iteration_bounds = array<i64: 1>, scalar_prefetch = 0 : i64, scratch_operands = 0 : i64, tpu.core_type = #tpu.core_type<tc>, window_params = [{pipeline_mode = #tpu.pipeline_mode<synchronous>, transform_indices = @transform_0, window_bounds = array<i64: 96, 24>}, {transform_indices = @transform_1, window_bounds = array<i64: 1, 24, 512>}, {transform_indices = @transform_2, window_bounds = array<i64: 1, 8, 1536>}, {transform_indices = @transform_3, window_bounds = array<i64: 1, 512, 128>}, {transform_indices = @transform_4, window_bounds = array<i64: 1, 24, 512>}, {transform_indices = @transform_5, window_bounds = array<i64: 1, 24, 128>}]} {
    %c0 = arith.constant 0 : index
    %c0_0 = arith.constant 0 : index
    %0 = vector.load %arg1[%c0, %c0_0] : memref<96x24xf32, #tpu.memory_space<vmem>>, vector<96x24xf32>
    %1 = arith.truncf %0 : vector<96x24xf32> to vector<96x24xbf16>
    %c0_1 = arith.constant 0 : index
    %c0_2 = arith.constant 0 : index
    %c0_3 = arith.constant 0 : index
    %2 = vector.load %arg2[%c0_1, %c0_2, %c0_3] : memref<1x24x512xbf16, #tpu.memory_space<vmem>>, vector<1x24x512xbf16>
    %3 = vector.shape_cast %2 : vector<1x24x512xbf16> to vector<24x512xbf16>
    %cst = arith.constant dense<0.000000e+00> : vector<96x512xf32>
    %4 = tpu.matmul %1, %3, %cst {dimension_numbers = #tpu.dot_dimension_numbers<[1], [0], [0], [1], [0, 0, 1, 1], [], []>} : vector<96x24xbf16>, vector<24x512xbf16>, vector<96x512xf32> -> vector<96x512xf32>
    %c0_4 = arith.constant 0 : index
    %c0_5 = arith.constant 0 : index
    %c0_6 = arith.constant 0 : index
    %5 = vector.load %arg3[%c0_4, %c0_5, %c0_6] : memref<1x8x1536xf32, #tpu.memory_space<vmem>>, vector<1x8x1536xf32>
    %6 = vector.shape_cast %5 : vector<1x8x1536xf32> to vector<8x1536xf32>
    %7 = vector.extract_strided_slice %4 {offsets = [72, 0], sizes = [24, 512], strides = [1, 1]} : vector<96x512xf32> to vector<24x512xf32>
    %8 = vector.extract_strided_slice %6 {offsets = [0, 0], sizes = [8, 512], strides = [1, 1]} : vector<8x1536xf32> to vector<8x512xf32>
    %9 = tpu.concatenate %8, %8, %8 in 0 : vector<8x512xf32>, vector<8x512xf32>, vector<8x512xf32> -> vector<24x512xf32>
    %10 = vector.extract_strided_slice %4 {offsets = [0, 0], sizes = [24, 512], strides = [1, 1]} : vector<96x512xf32> to vector<24x512xf32>
    %11 = arith.mulf %10, %9 : vector<24x512xf32>
    %12 = arith.addf %7, %11 : vector<24x512xf32>
    %13 = vector.extract_strided_slice %6 {offsets = [0, 512], sizes = [8, 512], strides = [1, 1]} : vector<8x1536xf32> to vector<8x512xf32>
    %14 = tpu.concatenate %13, %13, %13 in 0 : vector<8x512xf32>, vector<8x512xf32>, vector<8x512xf32> -> vector<24x512xf32>
    %15 = vector.extract_strided_slice %4 {offsets = [24, 0], sizes = [24, 512], strides = [1, 1]} : vector<96x512xf32> to vector<24x512xf32>
    %16 = arith.mulf %15, %14 : vector<24x512xf32>
    %17 = arith.addf %12, %16 : vector<24x512xf32>
    %18 = vector.extract_strided_slice %6 {offsets = [0, 1024], sizes = [8, 512], strides = [1, 1]} : vector<8x1536xf32> to vector<8x512xf32>
    %19 = tpu.concatenate %18, %18, %18 in 0 : vector<8x512xf32>, vector<8x512xf32>, vector<8x512xf32> -> vector<24x512xf32>
    %20 = vector.extract_strided_slice %4 {offsets = [48, 0], sizes = [24, 512], strides = [1, 1]} : vector<96x512xf32> to vector<24x512xf32>
    %21 = arith.mulf %20, %19 : vector<24x512xf32>
    %22 = arith.addf %17, %21 : vector<24x512xf32>
    %c0_7 = arith.constant 0 : index
    %c0_8 = arith.constant 0 : index
    %c0_9 = arith.constant 0 : index
    %23 = vector.load %arg5[%c0_7, %c0_8, %c0_9] : memref<1x24x512xf32, #tpu.memory_space<vmem>>, vector<1x24x512xf32>
    %24 = vector.shape_cast %23 : vector<1x24x512xf32> to vector<24x512xf32>
    %25 = vector.shape_cast %22 : vector<24x512xf32> to vector<1x24x512xf32>
    tpu.vector_store %arg5[%c0_7, %c0_8, %c0_9], %25 {strides = array<i32>} : memref<1x24x512xf32, #tpu.memory_space<vmem>>, vector<1x24x512xf32>,
    %26 = arith.truncf %22 : vector<24x512xf32> to vector<24x512xbf16>
    %c0_10 = arith.constant 0 : index
    %c0_11 = arith.constant 0 : index
    %c0_12 = arith.constant 0 : index
    %27 = vector.load %arg4[%c0_10, %c0_11, %c0_12] : memref<1x512x128xbf16, #tpu.memory_space<vmem>>, vector<1x512x128xbf16>
    %28 = vector.shape_cast %27 : vector<1x512x128xbf16> to vector<512x128xbf16>
    %cst_13 = arith.constant dense<0.000000e+00> : vector<24x128xf32>
    %29 = tpu.matmul %26, %28, %cst_13 {dimension_numbers = #tpu.dot_dimension_numbers<[1], [0], [0], [1], [0, 0, 1, 1], [], []>} : vector<24x512xbf16>, vector<512x128xbf16>, vector<24x128xf32> -> vector<24x128xf32>
    %c0_14 = arith.constant 0 : index
    %c0_15 = arith.constant 0 : index
    %c0_16 = arith.constant 0 : index
    %30 = vector.load %arg6[%c0_14, %c0_15, %c0_16] : memref<1x24x128xf32, #tpu.memory_space<vmem>>, vector<1x24x128xf32>
    %31 = vector.shape_cast %30 : vector<1x24x128xf32> to vector<24x128xf32>
    %32 = vector.shape_cast %29 : vector<24x128xf32> to vector<1x24x128xf32>
    tpu.vector_store %arg6[%c0_14, %c0_15, %c0_16], %32 {strides = array<i32>} : memref<1x24x128xf32, #tpu.memory_space<vmem>>, vector<1x24x128xf32>,
    return
  }
  func.func @transform_0(%arg0: i32) -> (i32, i32) {
    %c0_i32 = arith.constant 0 : i32
    %c0_i32_0 = arith.constant 0 : i32
    %c0_i32_1 = arith.constant 0 : i32
    return %c0_i32, %c0_i32_0 : i32, i32
  }
  func.func @transform_1(%arg0: i32) -> (i32, i32, i32) {
    %c0_i32 = arith.constant 0 : i32
    %c0_i32_0 = arith.constant 0 : i32
    %c0_i32_1 = arith.constant 0 : i32
    return %arg0, %c0_i32, %c0_i32_0 : i32, i32, i32
  }
  func.func @transform_2(%arg0: i32) -> (i32, i32, i32) {
    %c0_i32 = arith.constant 0 : i32
    %c0_i32_0 = arith.constant 0 : i32
    %c0_i32_1 = arith.constant 0 : i32
    return %arg0, %c0_i32, %c0_i32_0 : i32, i32, i32
  }
  func.func @transform_3(%arg0: i32) -> (i32, i32, i32) {
    %c0_i32 = arith.constant 0 : i32
    %c0_i32_0 = arith.constant 0 : i32
    %c0_i32_1 = arith.constant 0 : i32
    return %arg0, %c0_i32, %c0_i32_0 : i32, i32, i32
  }
  func.func @transform_4(%arg0: i32) -> (i32, i32, i32) {
    %c0_i32 = arith.constant 0 : i32
    %c0_i32_0 = arith.constant 0 : i32
    %c0_i32_1 = arith.constant 0 : i32
    return %arg0, %c0_i32, %c0_i32_0 : i32, i32, i32
  }
  func.func @transform_5(%arg0: i32) -> (i32, i32, i32) {
    %c0_i32 = arith.constant 0 : i32
    %c0_i32_0 = arith.constant 0 : i32
    %c0_i32_1 = arith.constant 0 : i32
    return %arg0, %c0_i32, %c0_i32_0 : i32, i32, i32
  }
}

</mosaic_0001>

<llo_original>
// kernel: _lambda_.3
$region0: #{_lambda_.3}
  #allocation0 [shape = 'u32[]', space=smem, size = 0x4, offset = 0x4, fixed_abs, tag = 'smem constant byte address 0x4 - core index']
  #allocation1 [shape = 'u32[72,128]{1,0:T(1,128)}', space=vmem, size = 0x9000, scoped, tag = 'internal scratch']
  %s0 = inlined_call_operand.vmem [shape: f32[96,24], index: 0, kind: input, shape index: {}]
  %s1 = inlined_call_operand.vmem [shape: bf16[1,24,512], index: 1, kind: input, shape index: {}]
  %s2 = inlined_call_operand.vmem [shape: f32[1,8,1536], index: 2, kind: input, shape index: {}]
  %s3 = inlined_call_operand.vmem [shape: bf16[1,512,128], index: 3, kind: input, shape index: {}]
  %s4 = inlined_call_operand.vmem [shape: f32[1,24,512], index: 4, kind: output, shape index: {0}]
  %s5 = inlined_call_operand.vmem [shape: f32[1,24,128], index: 5, kind: output, shape index: {1}]
  %6 = xla_tuple %s4, %s5
  %s7 = sld [smem:[#allocation0]]
  $region34: #{_lambda_.3} parent=0
    _
  %s9 = ssub.s32 1, %s7
  %s10 = scalar_select 0, %s9, %s7
  // Predicated region
  $region2: #{_lambda_.3} parent=0 // pred_check
    _
  $region3: #{_lambda_.3} parent=0 // pred_check_branch
    %12 = sbr.rel (0) target = $region5
  $region4: #{_lambda_.3} parent=0 // pred_region
    _
  $region5: #{_lambda_.3} parent=0 // pred_fallthru
    _
  // Predicated region
  $region6: #{_lambda_.3} parent=0 // pred_check
    _
  $region7: #{_lambda_.3} parent=0 // pred_check_branch
    %14 = sbr.rel (0) target = $region9
  $region8: #{_lambda_.3} parent=0 // pred_region
    _
  $region9: #{_lambda_.3} parent=0 // pred_fallthru
    _
  // Predicated region
  $region10: #{_lambda_.3} parent=0 // pred_check
    _
  $region11: #{_lambda_.3} parent=0 // pred_check_branch
    %16 = sbr.rel (0) target = $region13
  $region12: #{_lambda_.3} parent=0 // pred_region
    _
  $region13: #{_lambda_.3} parent=0 // pred_fallthru
    _
  // Predicated region
  $region14: #{_lambda_.3} parent=0 // pred_check
    _
  $region15: #{_lambda_.3} parent=0 // pred_check_branch
    %18 = sbr.rel (0) target = $region17
  $region16: #{_lambda_.3} parent=0 // pred_region
    _
  $region17: #{_lambda_.3} parent=0 // pred_fallthru
    _
  %v20 = vld [vmem:[%s0] sm:$0xff]
  %v21 = vld [vmem:[%s0 + $0x8] sm:$0xff]
  %v22 = vld [vmem:[%s0 + $0x10] sm:$0xff]
  %v23 = vld [vmem:[%s0 + $0x18] sm:$0xff]
  %v24 = vld [vmem:[%s0 + $0x20] sm:$0xff]
  %v25 = vld [vmem:[%s0 + $0x28] sm:$0xff]
  %v26 = vld [vmem:[%s0 + $0x30] sm:$0xff]
  %v27 = vld [vmem:[%s0 + $0x38] sm:$0xff]
  %v28 = vld [vmem:[%s0 + $0x40] sm:$0xff]
  %v29 = vld [vmem:[%s0 + $0x48] sm:$0xff]
  %v30 = vld [vmem:[%s0 + $0x50] sm:$0xff]
  %v31 = vld [vmem:[%s0 + $0x58] sm:$0xff]
  %v32 = vpack.c.bf16 %v21, %v20
  %v33 = vpack.c.bf16 %v23, %v22
  %v34 = vpack.c.bf16 %v25, %v24
  %v35 = vpack.c.bf16 %v27, %v26
  %v36 = vpack.c.bf16 %v29, %v28
  %v37 = vpack.c.bf16 %v31, %v30
  %v38 = vld [vmem:[%s1] sm:$0xff]
  %v39 = vld [vmem:[%s1 + $0x8] sm:$0xff]
  %v40 = vld [vmem:[%s1 + $0x10] sm:$0xff]
  %v41 = vld [vmem:[%s1 + $0x18] sm:$0xff]
  %v42 = vld [vmem:[%s1 + $0x20] sm:$0xff]
  %v43 = vld [vmem:[%s1 + $0x28] sm:$0xff]
  %v50 = vunpack.c.l.b16 %v38
  %v51 = vunpack.c.h.b16 %v38
  %v52 = vunpack.c.l.b16 %v39
  %v53 = vunpack.c.h.b16 %v39
  %v54 = vunpack.c.l.b16 %v40
  %v55 = vunpack.c.h.b16 %v40
  %v56 = vunpack.c.l.b16 %v41
  %v57 = vunpack.c.h.b16 %v41
  %v58 = vunpack.c.l.b16 %v42
  %v59 = vunpack.c.h.b16 %v42
  %v60 = vunpack.c.l.b16 %v43
  %v61 = vunpack.c.h.b16 %v43
  %v62 = vpack.c.b16 %v54, %v50
  %v63 = vpack.c.b16 %v55, %v51
  %v64 = vpack.c.b16 %v56, %v52
  %v65 = vpack.c.b16 %v57, %v53
  %v66 = vpack.c.b16 %v58, %v58
  %v67 = vpack.c.b16 %v59, %v59
  %v68 = vpack.c.b16 %v60, %v60
  %v69 = vpack.c.b16 %v61, %v61
  %vm74 = vcmask 195584
  %v76 = vsel %vm74, %v32, 0
  %v79 = vsel %vm74, %v33, 0
  %v82 = vsel %vm74, %v34, 0
  %v85 = vsel %vm74, %v35, 0
  %v88 = vsel %vm74, %v36, 0
  %v91 = vsel %vm74, %v37, 0
  %vm93 = vcmask 1043456
  %v95 = vsel %vm93, %v66, 0
  %v98 = vsel %vm93, %v67, 0
  %v101 = vsel %vm93, %v68, 0
  %v104 = vsel %vm93, %v69, 0
  %106 = vmatpush.bf16.msra.mxu0 0
  %107 = vmatpush.bf16.msra.mxu0 0
  %108 = vmatpush.bf16.msra.mxu0 0
  %109 = vmatpush.bf16.msra.mxu0 0
  %110 = vmatpush.bf16.msra.mxu0 0
  %111 = vmatpush.bf16.msra.mxu0 0
  %112 = vmatpush.bf16.msra.mxu0 %v95
  %113 = vmatpush.bf16.msra.mxu0 %v62
  %114 = vmatmul.bf16.gmra.mxu0 %v76
  %v115 = vpop.f32.mrf.mxu0
  %v116 = vadd.f32 0.0, %v115
  %v117 = vpop.f32.mrf.mxu0
  %v118 = vadd.f32 0.0, %v117
  %119 = vmatmul.bf16.gmra.mxu0 %v79
  %v120 = vpop.f32.mrf.mxu0
  %v121 = vadd.f32 0.0, %v120
  %v122 = vpop.f32.mrf.mxu0
  %v123 = vadd.f32 0.0, %v122
  %124 = vmatmul.bf16.gmra.mxu0 %v82
  %v125 = vpop.f32.mrf.mxu0
  %v126 = vadd.f32 0.0, %v125
  %v127 = vpop.f32.mrf.mxu0
  %v128 = vadd.f32 0.0, %v127
  %129 = vmatmul.bf16.gmra.mxu0 %v85
  %v130 = vpop.f32.mrf.mxu0
  %v131 = vadd.f32 0.0, %v130
  %v132 = vpop.f32.mrf.mxu0
  %v133 = vadd.f32 0.0, %v132
  %134 = vmatmul.bf16.gmra.mxu0 %v88
  %v135 = vpop.f32.mrf.mxu0
  %v136 = vadd.f32 0.0, %v135
  %v137 = vpop.f32.mrf.mxu0
  %v138 = vadd.f32 0.0, %v137
  %139 = vmatmul.bf16.gmra.mxu0 %v91
  %v140 = vpop.f32.mrf.mxu0
  %v141 = vadd.f32 0.0, %v140
  %v142 = vpop.f32.mrf.mxu0
  %v143 = vadd.f32 0.0, %v142
  %144 = vdwg.mxu0
  %145 = vmatpush.bf16.msra.mxu0 0
  %146 = vmatpush.bf16.msra.mxu0 0
  %147 = vmatpush.bf16.msra.mxu0 0
  %148 = vmatpush.bf16.msra.mxu0 0
  %149 = vmatpush.bf16.msra.mxu0 0
  %150 = vmatpush.bf16.msra.mxu0 0
  %151 = vmatpush.bf16.msra.mxu0 %v98
  %152 = vmatpush.bf16.msra.mxu0 %v63
  %153 = vmatmul.bf16.gmra.mxu0 %v76
  %v154 = vpop.f32.mrf.mxu0
  %v155 = vadd.f32 0.0, %v154
  %v156 = vpop.f32.mrf.mxu0
  %v157 = vadd.f32 0.0, %v156
  %158 = vmatmul.bf16.gmra.mxu0 %v79
  %v159 = vpop.f32.mrf.mxu0
  %v160 = vadd.f32 0.0, %v159
  %v161 = vpop.f32.mrf.mxu0
  %v162 = vadd.f32 0.0, %v161
  %163 = vmatmul.bf16.gmra.mxu0 %v82
  %v164 = vpop.f32.mrf.mxu0
  %v165 = vadd.f32 0.0, %v164
  %v166 = vpop.f32.mrf.mxu0
  %v167 = vadd.f32 0.0, %v166
  %168 = vmatmul.bf16.gmra.mxu0 %v85
  %v169 = vpop.f32.mrf.mxu0
  %v170 = vadd.f32 0.0, %v169
  %v171 = vpop.f32.mrf.mxu0
  %v172 = vadd.f32 0.0, %v171
  %173 = vmatmul.bf16.gmra.mxu0 %v88
  %v174 = vpop.f32.mrf.mxu0
  %v175 = vadd.f32 0.0, %v174
  %v176 = vpop.f32.mrf.mxu0
  %v177 = vadd.f32 0.0, %v176
  %178 = vmatmul.bf16.gmra.mxu0 %v91
  %v179 = vpop.f32.mrf.mxu0
  %v180 = vadd.f32 0.0, %v179
  %v181 = vpop.f32.mrf.mxu0
  %v182 = vadd.f32 0.0, %v181
  %183 = vdwg.mxu0
  %184 = vmatpush.bf16.msra.mxu0 0
  %185 = vmatpush.bf16.msra.mxu0 0
  %186 = vmatpush.bf16.msra.mxu0 0
  %187 = vmatpush.bf16.msra.mxu0 0
  %188 = vmatpush.bf16.msra.mxu0 0
  %189 = vmatpush.bf16.msra.mxu0 0
  %190 = vmatpush.bf16.msra.mxu0 %v101
  %191 = vmatpush.bf16.msra.mxu0 %v64
  %192 = vmatmul.bf16.gmra.mxu0 %v76
  %v193 = vpop.f32.mrf.mxu0
  %v194 = vadd.f32 0.0, %v193
  %v195 = vpop.f32.mrf.mxu0
  %v196 = vadd.f32 0.0, %v195
  %197 = vmatmul.bf16.gmra.mxu0 %v79
  %v198 = vpop.f32.mrf.mxu0
  %v199 = vadd.f32 0.0, %v198
  %v200 = vpop.f32.mrf.mxu0
  %v201 = vadd.f32 0.0, %v200
  %202 = vmatmul.bf16.gmra.mxu0 %v82
  %v203 = vpop.f32.mrf.mxu0
  %v204 = vadd.f32 0.0, %v203
  %v205 = vpop.f32.mrf.mxu0
  %v206 = vadd.f32 0.0, %v205
  %207 = vmatmul.bf16.gmra.mxu0 %v85
  %v208 = vpop.f32.mrf.mxu0
  %v209 = vadd.f32 0.0, %v208
  %v210 = vpop.f32.mrf.mxu0
  %v211 = vadd.f32 0.0, %v210
  %212 = vmatmul.bf16.gmra.mxu0 %v88
  %v213 = vpop.f32.mrf.mxu0
  %v214 = vadd.f32 0.0, %v213
  %v215 = vpop.f32.mrf.mxu0
  %v216 = vadd.f32 0.0, %v215
  %217 = vmatmul.bf16.gmra.mxu0 %v91
  %v218 = vpop.f32.mrf.mxu0
  %v219 = vadd.f32 0.0, %v218
  %v220 = vpop.f32.mrf.mxu0
  %v221 = vadd.f32 0.0, %v220
  %222 = vdwg.mxu0
  %223 = vmatpush.bf16.msra.mxu0 0
  %224 = vmatpush.bf16.msra.mxu0 0
  %225 = vmatpush.bf16.msra.mxu0 0
  %226 = vmatpush.bf16.msra.mxu0 0
  %227 = vmatpush.bf16.msra.mxu0 0
  %228 = vmatpush.bf16.msra.mxu0 0
  %229 = vmatpush.bf16.msra.mxu0 %v104
  %230 = vmatpush.bf16.msra.mxu0 %v65
  %231 = vmatmul.bf16.gmra.mxu0 %v76
  %v232 = vpop.f32.mrf.mxu0
  %v233 = vadd.f32 0.0, %v232
  %v234 = vpop.f32.mrf.mxu0
  %v235 = vadd.f32 0.0, %v234
  %236 = vmatmul.bf16.gmra.mxu0 %v79
  %v237 = vpop.f32.mrf.mxu0
  %v238 = vadd.f32 0.0, %v237
  %v239 = vpop.f32.mrf.mxu0
  %v240 = vadd.f32 0.0, %v239
  %241 = vmatmul.bf16.gmra.mxu0 %v82
  %v242 = vpop.f32.mrf.mxu0
  %v243 = vadd.f32 0.0, %v242
  %v244 = vpop.f32.mrf.mxu0
  %v245 = vadd.f32 0.0, %v244
  %246 = vmatmul.bf16.gmra.mxu0 %v85
  %v247 = vpop.f32.mrf.mxu0
  %v248 = vadd.f32 0.0, %v247
  %v249 = vpop.f32.mrf.mxu0
  %v250 = vadd.f32 0.0, %v249
  %251 = vmatmul.bf16.gmra.mxu0 %v88
  %v252 = vpop.f32.mrf.mxu0
  %v253 = vadd.f32 0.0, %v252
  %v254 = vpop.f32.mrf.mxu0
  %v255 = vadd.f32 0.0, %v254
  %256 = vmatmul.bf16.gmra.mxu0 %v91
  %v257 = vpop.f32.mrf.mxu0
  %v258 = vadd.f32 0.0, %v257
  %v259 = vpop.f32.mrf.mxu0
  %v260 = vadd.f32 0.0, %v259
  %261 = vdwg.mxu0
  %v262 = vld [vmem:[%s2] sm:$0xff]
  %v263 = vld [vmem:[%s2 + $0x8] sm:$0xff]
  %v264 = vld [vmem:[%s2 + $0x10] sm:$0xff]
  %v265 = vld [vmem:[%s2 + $0x18] sm:$0xff]
  %v266 = vld [vmem:[%s2 + $0x20] sm:$0xff]
  %v267 = vld [vmem:[%s2 + $0x28] sm:$0xff]
  %v268 = vld [vmem:[%s2 + $0x30] sm:$0xff]
  %v269 = vld [vmem:[%s2 + $0x38] sm:$0xff]
  %v270 = vld [vmem:[%s2 + $0x40] sm:$0xff]
  %v271 = vld [vmem:[%s2 + $0x48] sm:$0xff]
  %v272 = vld [vmem:[%s2 + $0x50] sm:$0xff]
  %v273 = vld [vmem:[%s2 + $0x58] sm:$0xff]
  %v274 = vmul.f32 %v116, %v262
  %v275 = vmul.f32 %v155, %v263
  %v276 = vmul.f32 %v194, %v264
  %v277 = vmul.f32 %v233, %v265
  %v278 = vmul.f32 %v118, %v262
  %v279 = vmul.f32 %v157, %v263
  %v280 = vmul.f32 %v196, %v264
  %v281 = vmul.f32 %v235, %v265
  %v282 = vmul.f32 %v121, %v262
  %v283 = vmul.f32 %v160, %v263
  %v284 = vmul.f32 %v199, %v264
  %v285 = vmul.f32 %v238, %v265
  %v286 = vadd.f32 %v138, %v274
  %v287 = vadd.f32 %v177, %v275
  %v288 = vadd.f32 %v216, %v276
  %v289 = vadd.f32 %v255, %v277
  %v290 = vadd.f32 %v141, %v278
  %v291 = vadd.f32 %v180, %v279
  %v292 = vadd.f32 %v219, %v280
  %v293 = vadd.f32 %v258, %v281
  %v294 = vadd.f32 %v143, %v282
  %v295 = vadd.f32 %v182, %v283
  %v296 = vadd.f32 %v221, %v284
  %v297 = vadd.f32 %v260, %v285
  %v298 = vmul.f32 %v123, %v266
  %v299 = vmul.f32 %v162, %v267
  %v300 = vmul.f32 %v201, %v268
  %v301 = vmul.f32 %v240, %v269
  %v302 = vmul.f32 %v126, %v266
  %v303 = vmul.f32 %v165, %v267
  %v304 = vmul.f32 %v204, %v268
  %v305 = vmul.f32 %v243, %v269
  %v306 = vmul.f32 %v128, %v266
  %v307 = vmul.f32 %v167, %v267
  %v308 = vmul.f32 %v206, %v268
  %v309 = vmul.f32 %v245, %v269
  %v310 = vadd.f32 %v286, %v298
  %v311 = vadd.f32 %v287, %v299
  %v312 = vadd.f32 %v288, %v300
  %v313 = vadd.f32 %v289, %v301
  %v314 = vadd.f32 %v290, %v302
  %v315 = vadd.f32 %v291, %v303
  %v316 = vadd.f32 %v292, %v304
  %v317 = vadd.f32 %v293, %v305
  %v318 = vadd.f32 %v294, %v306
  %v319 = vadd.f32 %v295, %v307
  %v320 = vadd.f32 %v296, %v308
  %v321 = vadd.f32 %v297, %v309
  %v322 = vmul.f32 %v131, %v270
  %v323 = vmul.f32 %v170, %v271
  %v324 = vmul.f32 %v209, %v272
  %v325 = vmul.f32 %v248, %v273
  %v326 = vmul.f32 %v133, %v270
  %v327 = vmul.f32 %v172, %v271
  %v328 = vmul.f32 %v211, %v272
  %v329 = vmul.f32 %v250, %v273
  %v330 = vmul.f32 %v136, %v270
  %v331 = vmul.f32 %v175, %v271
  %v332 = vmul.f32 %v214, %v272
  %v333 = vmul.f32 %v253, %v273
  %v334 = vadd.f32 %v310, %v322
  %v335 = vadd.f32 %v311, %v323
  %v336 = vadd.f32 %v312, %v324
  %v337 = vadd.f32 %v313, %v325
  %v338 = vadd.f32 %v314, %v326
  %v339 = vadd.f32 %v315, %v327
  %v340 = vadd.f32 %v316, %v328
  %v341 = vadd.f32 %v317, %v329
  %v342 = vadd.f32 %v318, %v330
  %v343 = vadd.f32 %v319, %v331
  %v344 = vadd.f32 %v320, %v332
  %v345 = vadd.f32 %v321, %v333
  %346 = vst [vmem:[%s4] sm:$0xff] %v334
  %347 = vst [vmem:[%s4 + $0x8] sm:$0xff] %v335
  %348 = vst [vmem:[%s4 + $0x10] sm:$0xff] %v336
  %349 = vst [vmem:[%s4 + $0x18] sm:$0xff] %v337
  %350 = vst [vmem:[%s4 + $0x20] sm:$0xff] %v338
  %351 = vst [vmem:[%s4 + $0x28] sm:$0xff] %v339
  %352 = vst [vmem:[%s4 + $0x30] sm:$0xff] %v340
  %353 = vst [vmem:[%s4 + $0x38] sm:$0xff] %v341
  %354 = vst [vmem:[%s4 + $0x40] sm:$0xff] %v342
  %355 = vst [vmem:[%s4 + $0x48] sm:$0xff] %v343
  %356 = vst [vmem:[%s4 + $0x50] sm:$0xff] %v344
  %357 = vst [vmem:[%s4 + $0x58] sm:$0xff] %v345
  %v358 = vpack.c.bf16 %v338, %v334
  %v359 = vpack.c.bf16 %v339, %v335
  %v360 = vpack.c.bf16 %v340, %v336
  %v361 = vpack.c.bf16 %v341, %v337
  %v362 = vpack.c.bf16 %v342, %v342
  %v363 = vpack.c.bf16 %v343, %v343
  %v364 = vpack.c.bf16 %v344, %v344
  %v365 = vpack.c.bf16 %v345, %v345
  %v366 = vld [vmem:[%s3] sm:$0xf]
  %v367 = vld [vmem:[%s3 + $0x4] sm:$0xf]
  %v368 = vld [vmem:[%s3 + $0x8] sm:$0xf]
  %v369 = vld [vmem:[%s3 + $0xc] sm:$0xf]
  %v370 = vld [vmem:[%s3 + $0x10] sm:$0xf]
  %v371 = vld [vmem:[%s3 + $0x14] sm:$0xf]
  %v372 = vld [vmem:[%s3 + $0x18] sm:$0xf]
  %v373 = vld [vmem:[%s3 + $0x1c] sm:$0xf]
  %v374 = vld [vmem:[%s3 + $0x20] sm:$0xf]
  %v375 = vld [vmem:[%s3 + $0x24] sm:$0xf]
  %v376 = vld [vmem:[%s3 + $0x28] sm:$0xf]
  %v377 = vld [vmem:[%s3 + $0x2c] sm:$0xf]
  %v378 = vld [vmem:[%s3 + $0x30] sm:$0xf]
  %v379 = vld [vmem:[%s3 + $0x34] sm:$0xf]
  %v380 = vld [vmem:[%s3 + $0x38] sm:$0xf]
  %v381 = vld [vmem:[%s3 + $0x3c] sm:$0xf]
  %v382 = vld [vmem:[%s3 + $0x40] sm:$0xf]
  %v383 = vld [vmem:[%s3 + $0x44] sm:$0xf]
  %v384 = vld [vmem:[%s3 + $0x48] sm:$0xf]
  %v385 = vld [vmem:[%s3 + $0x4c] sm:$0xf]
  %v386 = vld [vmem:[%s3 + $0x50] sm:$0xf]
  %v387 = vld [vmem:[%s3 + $0x54] sm:$0xf]
  %v388 = vld [vmem:[%s3 + $0x58] sm:$0xf]
  %v389 = vld [vmem:[%s3 + $0x5c] sm:$0xf]
  %v390 = vld [vmem:[%s3 + $0x60] sm:$0xf]
  %v391 = vld [vmem:[%s3 + $0x64] sm:$0xf]
  %v392 = vld [vmem:[%s3 + $0x68] sm:$0xf]
  %v393 = vld [vmem:[%s3 + $0x6c] sm:$0xf]
  %v394 = vld [vmem:[%s3 + $0x70] sm:$0xf]
  %v395 = vld [vmem:[%s3 + $0x74] sm:$0xf]
  %v396 = vld [vmem:[%s3 + $0x78] sm:$0xf]
  %v397 = vld [vmem:[%s3 + $0x7c] sm:$0xf]
  %v398 = vld [vmem:[%s3 + $0x80] sm:$0xf]
  %v399 = vld [vmem:[%s3 + $0x84] sm:$0xf]
  %v400 = vld [vmem:[%s3 + $0x88] sm:$0xf]
  %v401 = vld [vmem:[%s3 + $0x8c] sm:$0xf]
  %v402 = vld [vmem:[%s3 + $0x90] sm:$0xf]
  %v403 = vld [vmem:[%s3 + $0x94] sm:$0xf]
  %v404 = vld [vmem:[%s3 + $0x98] sm:$0xf]
  %v405 = vld [vmem:[%s3 + $0x9c] sm:$0xf]
  %v406 = vld [vmem:[%s3 + $0xa0] sm:$0xf]
  %v407 = vld [vmem:[%s3 + $0xa4] sm:$0xf]
  %v408 = vld [vmem:[%s3 + $0xa8] sm:$0xf]
  %v409 = vld [vmem:[%s3 + $0xac] sm:$0xf]
  %v410 = vld [vmem:[%s3 + $0xb0] sm:$0xf]
  %v411 = vld [vmem:[%s3 + $0xb4] sm:$0xf]
  %v412 = vld [vmem:[%s3 + $0xb8] sm:$0xf]
  %v413 = vld [vmem:[%s3 + $0xbc] sm:$0xf]
  %v414 = vld [vmem:[%s3 + $0xc0] sm:$0xf]
  %v415 = vld [vmem:[%s3 + $0xc4] sm:$0xf]
  %v416 = vld [vmem:[%s3 + $0xc8] sm:$0xf]
  %v417 = vld [vmem:[%s3 + $0xcc] sm:$0xf]
  %v418 = vld [vmem:[%s3 + $0xd0] sm:$0xf]
  %v419 = vld [vmem:[%s3 + $0xd4] sm:$0xf]
  %v420 = vld [vmem:[%s3 + $0xd8] sm:$0xf]
  %v421 = vld [vmem:[%s3 + $0xdc] sm:$0xf]
  %v422 = vld [vmem:[%s3 + $0xe0] sm:$0xf]
  %v423 = vld [vmem:[%s3 + $0xe4] sm:$0xf]
  %v424 = vld [vmem:[%s3 + $0xe8] sm:$0xf]
  %v425 = vld [vmem:[%s3 + $0xec] sm:$0xf]
  %v426 = vld [vmem:[%s3 + $0xf0] sm:$0xf]
  %v427 = vld [vmem:[%s3 + $0xf4] sm:$0xf]
  %v428 = vld [vmem:[%s3 + $0xf8] sm:$0xf]
  %v429 = vld [vmem:[%s3 + $0xfc] sm:$0xf]
  %v494 = vunpack.c.l.b16 %v366
  %v495 = vunpack.c.l.b16 %v367
  %v496 = vunpack.c.l.b16 %v368
  %v497 = vunpack.c.l.b16 %v369
  %v498 = vunpack.c.l.b16 %v370
  %v499 = vunpack.c.l.b16 %v371
  %v500 = vunpack.c.l.b16 %v372
  %v501 = vunpack.c.l.b16 %v373
  %v502 = vunpack.c.l.b16 %v374
  %v503 = vunpack.c.l.b16 %v375
  %v504 = vunpack.c.l.b16 %v376
  %v505 = vunpack.c.l.b16 %v377
  %v506 = vunpack.c.l.b16 %v378
  %v507 = vunpack.c.l.b16 %v379
  %v508 = vunpack.c.l.b16 %v380
  %v509 = vunpack.c.l.b16 %v381
  %v510 = vunpack.c.l.b16 %v382
  %v511 = vunpack.c.l.b16 %v383
  %v512 = vunpack.c.l.b16 %v384
  %v513 = vunpack.c.l.b16 %v385
  %v514 = vunpack.c.l.b16 %v386
  %v515 = vunpack.c.l.b16 %v387
  %v516 = vunpack.c.l.b16 %v388
  %v517 = vunpack.c.l.b16 %v389
  %v518 = vunpack.c.l.b16 %v390
  %v519 = vunpack.c.l.b16 %v391
  %v520 = vunpack.c.l.b16 %v392
  %v521 = vunpack.c.l.b16 %v393
  %v522 = vunpack.c.l.b16 %v394
  %v523 = vunpack.c.l.b16 %v395
  %v524 = vunpack.c.l.b16 %v396
  %v525 = vunpack.c.l.b16 %v397
  %v526 = vunpack.c.l.b16 %v398
  %v527 = vunpack.c.l.b16 %v399
  %v528 = vunpack.c.l.b16 %v400
  %v529 = vunpack.c.l.b16 %v401
  %v530 = vunpack.c.l.b16 %v402
  %v531 = vunpack.c.l.b16 %v403
  %v532 = vunpack.c.l.b16 %v404
  %v533 = vunpack.c.l.b16 %v405
  %v534 = vunpack.c.l.b16 %v406
  %v535 = vunpack.c.l.b16 %v407
  %v536 = vunpack.c.l.b16 %v408
  %v537 = vunpack.c.l.b16 %v409
  %v538 = vunpack.c.l.b16 %v410
  %v539 = vunpack.c.l.b16 %v411
  %v540 = vunpack.c.l.b16 %v412
  %v541 = vunpack.c.l.b16 %v413
  %v542 = vunpack.c.l.b16 %v414
  %v543 = vunpack.c.l.b16 %v415
  %v544 = vunpack.c.l.b16 %v416
  %v545 = vunpack.c.l.b16 %v417
  %v546 = vunpack.c.l.b16 %v418
  %v547 = vunpack.c.l.b16 %v419
  %v548 = vunpack.c.l.b16 %v420
  %v549 = vunpack.c.l.b16 %v421
  %v550 = vunpack.c.l.b16 %v422
  %v551 = vunpack.c.l.b16 %v423
  %v552 = vunpack.c.l.b16 %v424
  %v553 = vunpack.c.l.b16 %v425
  %v554 = vunpack.c.l.b16 %v426
  %v555 = vunpack.c.l.b16 %v427
  %v556 = vunpack.c.l.b16 %v428
  %v557 = vunpack.c.l.b16 %v429
  %v558 = vpack.c.b16 %v495, %v494
  %v559 = vpack.c.b16 %v497, %v496
  %v560 = vpack.c.b16 %v499, %v498
  %v561 = vpack.c.b16 %v501, %v500
  %v562 = vpack.c.b16 %v503, %v502
  %v563 = vpack.c.b16 %v505, %v504
  %v564 = vpack.c.b16 %v507, %v506
  %v565 = vpack.c.b16 %v509, %v508
  %v566 = vpack.c.b16 %v511, %v510
  %v567 = vpack.c.b16 %v513, %v512
  %v568 = vpack.c.b16 %v515, %v514
  %v569 = vpack.c.b16 %v517, %v516
  %v570 = vpack.c.b16 %v519, %v518
  %v571 = vpack.c.b16 %v521, %v520
  %v572 = vpack.c.b16 %v523, %v522
  %v573 = vpack.c.b16 %v525, %v524
  %v574 = vpack.c.b16 %v527, %v526
  %v575 = vpack.c.b16 %v529, %v528
  %v576 = vpack.c.b16 %v531, %v530
  %v577 = vpack.c.b16 %v533, %v532
  %v578 = vpack.c.b16 %v535, %v534
  %v579 = vpack.c.b16 %v537, %v536
  %v580 = vpack.c.b16 %v539, %v538
  %v581 = vpack.c.b16 %v541, %v540
  %v582 = vpack.c.b16 %v543, %v542
  %v583 = vpack.c.b16 %v545, %v544
  %v584 = vpack.c.b16 %v547, %v546
  %v585 = vpack.c.b16 %v549, %v548
  %v586 = vpack.c.b16 %v551, %v550
  %v587 = vpack.c.b16 %v553, %v552
  %v588 = vpack.c.b16 %v555, %v554
  %v589 = vpack.c.b16 %v557, %v556
  %622 = vmatpush.bf16.msra.mxu0 %v565
  %623 = vmatpush.bf16.msra.mxu0 %v564
  %624 = vmatpush.bf16.msra.mxu0 %v563
  %625 = vmatpush.bf16.msra.mxu0 %v562
  %626 = vmatpush.bf16.msra.mxu0 %v561
  %627 = vmatpush.bf16.msra.mxu0 %v560
  %628 = vmatpush.bf16.msra.mxu0 %v559
  %629 = vmatpush.bf16.msra.mxu0 %v558
  %630 = vmatmul.bf16.gmra.mxu0 %v358
  %v631 = vpop.f32.mrf.mxu0
  %v632 = vadd.f32 0.0, %v631
  %v633 = vpop.f32.mrf.mxu0
  %v634 = vadd.f32 0.0, %v633
  %635 = vmatmul.bf16.gmra.mxu0 %v362
  %v636 = vpop.f32.mrf.mxu0
  %v637 = vadd.f32 0.0, %v636
  %v638 = vpop.f32.mrf.mxu0
  %639 = vdwg.mxu0
  %640 = vmatpush.bf16.msra.mxu0 %v573
  %641 = vmatpush.bf16.msra.mxu0 %v572
  %642 = vmatpush.bf16.msra.mxu0 %v571
  %643 = vmatpush.bf16.msra.mxu0 %v570
  %644 = vmatpush.bf16.msra.mxu0 %v569
  %645 = vmatpush.bf16.msra.mxu0 %v568
  %646 = vmatpush.bf16.msra.mxu0 %v567
  %647 = vmatpush.bf16.msra.mxu0 %v566
  %648 = vmatmul.bf16.gmra.mxu0 %v359
  %v649 = vpop.f32.mrf.mxu0
  %v650 = vadd.f32 %v632, %v649
  %v651 = vpop.f32.mrf.mxu0
  %v652 = vadd.f32 %v634, %v651
  %653 = vmatmul.bf16.gmra.mxu0 %v363
  %v654 = vpop.f32.mrf.mxu0
  %v655 = vadd.f32 %v637, %v654
  %v656 = vpop.f32.mrf.mxu0
  %657 = vdwg.mxu0
  %658 = vmatpush.bf16.msra.mxu0 %v581
  %659 = vmatpush.bf16.msra.mxu0 %v580
  %660 = vmatpush.bf16.msra.mxu0 %v579
  %661 = vmatpush.bf16.msra.mxu0 %v578
  %662 = vmatpush.bf16.msra.mxu0 %v577
  %663 = vmatpush.bf16.msra.mxu0 %v576
  %664 = vmatpush.bf16.msra.mxu0 %v575
  %665 = vmatpush.bf16.msra.mxu0 %v574
  %666 = vmatmul.bf16.gmra.mxu0 %v360
  %v667 = vpop.f32.mrf.mxu0
  %v668 = vadd.f32 %v650, %v667
  %v669 = vpop.f32.mrf.mxu0
  %v670 = vadd.f32 %v652, %v669
  %671 = vmatmul.bf16.gmra.mxu0 %v364
  %v672 = vpop.f32.mrf.mxu0
  %v673 = vadd.f32 %v655, %v672
  %v674 = vpop.f32.mrf.mxu0
  %675 = vdwg.mxu0
  %676 = vmatpush.bf16.msra.mxu0 %v589
  %677 = vmatpush.bf16.msra.mxu0 %v588
  %678 = vmatpush.bf16.msra.mxu0 %v587
  %679 = vmatpush.bf16.msra.mxu0 %v586
  %680 = vmatpush.bf16.msra.mxu0 %v585
  %681 = vmatpush.bf16.msra.mxu0 %v584
  %682 = vmatpush.bf16.msra.mxu0 %v583
  %683 = vmatpush.bf16.msra.mxu0 %v582
  %684 = vmatmul.bf16.gmra.mxu0 %v361
  %v685 = vpop.f32.mrf.mxu0
  %v686 = vadd.f32 %v668, %v685
  %v687 = vpop.f32.mrf.mxu0
  %v688 = vadd.f32 %v670, %v687
  %689 = vmatmul.bf16.gmra.mxu0 %v365
  %v690 = vpop.f32.mrf.mxu0
  %v691 = vadd.f32 %v673, %v690
  %v692 = vpop.f32.mrf.mxu0
  %693 = vdwg.mxu0
  %694 = vst [vmem:[%s5] sm:$0xff] %v686
  %695 = vst [vmem:[%s5 + $0x8] sm:$0xff] %v688
  %696 = vst [vmem:[%s5 + $0x10] sm:$0xff] %v691
  // Predicated region
  $region18: #{_lambda_.3} parent=0 // pred_check
    _
  $region19: #{_lambda_.3} parent=0 // pred_check_branch
    %698 = sbr.rel (0) target = $region21
  $region20: #{_lambda_.3} parent=0 // pred_region
    _
  $region21: #{_lambda_.3} parent=0 // pred_fallthru
    _
  // Predicated region
  $region22: #{_lambda_.3} parent=0 // pred_check
    _
  $region23: #{_lambda_.3} parent=0 // pred_check_branch
    %700 = sbr.rel (0) target = $region25
  $region24: #{_lambda_.3} parent=0 // pred_region
    _
  $region25: #{_lambda_.3} parent=0 // pred_fallthru
    _
  // Predicated region
  $region26: #{_lambda_.3} parent=0 // pred_check
    _
  $region27: #{_lambda_.3} parent=0 // pred_check_branch
    %702 = sbr.rel (0) target = $region29
  $region28: #{_lambda_.3} parent=0 // pred_region
    _
  $region29: #{_lambda_.3} parent=0 // pred_fallthru
    _
  // Predicated region
  $region30: #{_lambda_.3} parent=0 // pred_check
    _
  $region31: #{_lambda_.3} parent=0 // pred_check_branch
    %704 = sbr.rel (0) target = $region33
  $region32: #{_lambda_.3} parent=0 // pred_region
    _
  $region33: #{_lambda_.3} parent=0 // pred_fallthru
    _

// kernel: _lambda_.2
$region0: #{_lambda_.2}
  #allocation0 [shape = 'u32[]', space=smem, size = 0x4, offset = 0x4, fixed_abs, tag = 'smem constant byte address 0x4 - core index']
  #allocation1 [shape = 'u32[72,128]{1,0:T(1,128)}', space=vmem, size = 0x9000, scoped, tag = 'internal scratch']
  %s0 = inlined_call_operand.vmem [shape: f32[8,10], index: 0, kind: input, shape index: {}]
  %s1 = inlined_call_operand.vmem [shape: f32[8,208], index: 1, kind: input, shape index: {}]
  %s2 = inlined_call_operand.vmem [shape: f32[1,1,1536], index: 2, kind: input, shape index: {}]
  %s3 = inlined_call_operand.vmem [shape: bf16[1,10,1536], index: 3, kind: input, shape index: {}]
  %s4 = inlined_call_operand.hbm [shape: bf16[1,208,1536], index: 4, kind: input, shape index: {}]
  %s5 = inlined_call_operand.vmem [shape: bf16[1,512,128], index: 5, kind: input, shape index: {}]
  %s6 = inlined_call_operand.vmem [shape: f32[1,8,1536], index: 6, kind: output, shape index: {0}]
  %s7 = inlined_call_operand.vmem [shape: f32[1,24,128], index: 7, kind: output, shape index: {1}]
  %8 = xla_tuple %s6, %s7
  %s9 = sld [smem:[#allocation0]]
  $region46: #{_lambda_.2} parent=0
    _
  %s11 = ssub.s32 1, %s9
  %s12 = scalar_select 0, %s11, %s9
  $region1: #{_lambda_.2} parent=0
    #allocation2 [shape = 'u8[638976]{0}', space=vmem, size = 0x9c000, scoped, tag = 'input window, operand 4, single buffered']
    #allocation3 [shape = 's32[1]{0}', space=sflag, size = 0x4, scoped, tag = 'scoped memory for _lambda_.2']
    %13 = vsyncpa [#allocation3], 0
    // Predicated region
    $region2: #{_lambda_.2} parent=1 // pred_check
      _
    $region3: #{_lambda_.2} parent=1 // pred_check_branch
      %15 = sbr.rel (0) target = $region5
    $region4: #{_lambda_.2} parent=1 // pred_region
      _
    $region5: #{_lambda_.2} parent=1 // pred_fallthru
      _
    // Predicated region
    $region6: #{_lambda_.2} parent=1 // pred_check
      _
    $region7: #{_lambda_.2} parent=1 // pred_check_branch
      %17 = sbr.rel (0) target = $region9
    $region8: #{_lambda_.2} parent=1 // pred_region
      _
    $region9: #{_lambda_.2} parent=1 // pred_fallthru
      _
    // Predicated region
    $region10: #{_lambda_.2} parent=1 // pred_check
      _
    $region11: #{_lambda_.2} parent=1 // pred_check_branch
      %19 = sbr.rel (0) target = $region13
    $region12: #{_lambda_.2} parent=1 // pred_region
      _
    $region13: #{_lambda_.2} parent=1 // pred_fallthru
      _
    // Predicated region
    $region14: #{_lambda_.2} parent=1 // pred_check
      _
    $region15: #{_lambda_.2} parent=1 // pred_check_branch
      %21 = sbr.rel (0) target = $region17
    $region16: #{_lambda_.2} parent=1 // pred_region
      _
    $region17: #{_lambda_.2} parent=1 // pred_fallthru
      _
    // Predicated region
    $region18: #{_lambda_.2} parent=1 // pred_check
      _
    $region19: #{_lambda_.2} parent=1 // pred_check_branch
      %23 = sbr.rel (0) target = $region21
    $region20: #{_lambda_.2} parent=1 // pred_region
      %25 = vsyncadd [#allocation3], 0
      %s26 = sshll.u32 %s4, 4
      %s27 = int_to_ptr.hbm [resolvable:$true] %s26
      %s28 = sshll.u32 [#allocation2], 4
      %s29 = int_to_ptr.vmem [resolvable:$true] %s28
      %34 = dma.hbm_to_vmem [thread:$0]  %s27, 19968, %s29, [#allocation3], 768, 768, 48
    $region21: #{_lambda_.2} parent=1 // pred_fallthru
      _
    // Predicated region
    $region22: #{_lambda_.2} parent=1 // pred_check
      _
    $region23: #{_lambda_.2} parent=1 // pred_check_branch
      %36 = sbr.rel (0) target = $region25
    $region24: #{_lambda_.2} parent=1 // pred_region
      _
    $region25: #{_lambda_.2} parent=1 // pred_fallthru
      _
    // Predicated region
    $region26: #{_lambda_.2} parent=1 // pred_check
      _
    $region27: #{_lambda_.2} parent=1 // pred_check_branch
      %38 = sbr.rel (0) target = $region29
    $region28: #{_lambda_.2} parent=1 // pred_region
      %40 = dma.done [#allocation3], 19968
    $region29: #{_lambda_.2} parent=1 // pred_fallthru
      _
    %v42 = vld [vmem:[%s0] sm:$0xff]
    %v43 = vpack.c.bf16 %v42, %v42
    %v44 = vld [vmem:[%s1] sm:$0xff]
    %v45 = vld [vmem:[%s1 + $0x8] sm:$0xff]
    %v46 = vpack.c.bf16 %v44, %v44
    %v47 = vpack.c.bf16 %v45, %v45
    %v48 = vld [vmem:[%s3] sm:$0xff]
    %v49 = vld [vmem:[%s3 + $0x8] sm:$0xff]
    %v50 = vld [vmem:[%s3 + $0x10] sm:$0xff]
    %v51 = vld [vmem:[%s3 + $0x18] sm:$0xff]
    %v52 = vld [vmem:[%s3 + $0x20] sm:$0xff]
    %v53 = vld [vmem:[%s3 + $0x28] sm:$0xff]
    %v54 = vld [vmem:[%s3 + $0x30] sm:$0x11]
    %v55 = vld [vmem:[%s3 + $0x38] sm:$0x11]
    %v56 = vld [vmem:[%s3 + $0x40] sm:$0x11]
    %v57 = vld [vmem:[%s3 + $0x48] sm:$0x11]
    %v58 = vld [vmem:[%s3 + $0x50] sm:$0x11]
    %v59 = vld [vmem:[%s3 + $0x58] sm:$0x11]
    %v60 = vld [vmem:[%s2] sm:$0xff]
    %v61 = vld [vmem:[%s2 + $0x8] sm:$0xf]
    %v64 = vperm.slane %v60, 0
    %v65 = vperm.slane %v60, 1
    %v66 = vperm.slane %v60, 2
    %v67 = vperm.slane %v60, 3
    %v68 = vperm.slane %v60, 4
    %v69 = vperm.slane %v60, 5
    %v70 = vperm.slane %v60, 6
    %v71 = vperm.slane %v60, 7
    %v72 = vperm.slane %v61, 0
    %v73 = vperm.slane %v61, 1
    %v74 = vperm.slane %v61, 2
    %v75 = vperm.slane %v61, 3
    %v100 = vunpack.c.l.b16 %v48
    %v101 = vunpack.c.h.b16 %v48
    %v102 = vunpack.c.l.b16 %v49
    %v103 = vunpack.c.h.b16 %v49
    %v104 = vunpack.c.l.b16 %v50
    %v105 = vunpack.c.h.b16 %v50
    %v106 = vunpack.c.l.b16 %v51
    %v107 = vunpack.c.h.b16 %v51
    %v108 = vunpack.c.l.b16 %v52
    %v109 = vunpack.c.h.b16 %v52
    %v110 = vunpack.c.l.b16 %v53
    %v111 = vunpack.c.h.b16 %v53
    %v112 = vunpack.c.l.b16 %v54
    %v113 = vunpack.c.h.b16 %v54
    %v114 = vunpack.c.l.b16 %v55
    %v115 = vunpack.c.h.b16 %v55
    %v116 = vunpack.c.l.b16 %v56
    %v117 = vunpack.c.h.b16 %v56
    %v118 = vunpack.c.l.b16 %v57
    %v119 = vunpack.c.h.b16 %v57
    %v120 = vunpack.c.l.b16 %v58
    %v121 = vunpack.c.h.b16 %v58
    %v122 = vunpack.c.l.b16 %v59
    %v123 = vunpack.c.h.b16 %v59
    %v124 = vpack.c.b16 %v112, %v100
    %v125 = vpack.c.b16 %v113, %v101
    %v126 = vpack.c.b16 %v114, %v102
    %v127 = vpack.c.b16 %v115, %v103
    %v128 = vpack.c.b16 %v116, %v104
    %v129 = vpack.c.b16 %v117, %v105
    %v130 = vpack.c.b16 %v118, %v106
    %v131 = vpack.c.b16 %v119, %v107
    %v132 = vpack.c.b16 %v120, %v108
    %v133 = vpack.c.b16 %v121, %v109
    %v134 = vpack.c.b16 %v122, %v110
    %v135 = vpack.c.b16 %v123, %v111
    %vm136 = vcmask 80896
    %v138 = vsel %vm136, %v43, 0
    %vm140 = vcmask 1044480
    %v142 = vsel %vm140, %v124, 0
    %v145 = vsel %vm140, %v125, 0
    %v148 = vsel %vm140, %v126, 0
    %v151 = vsel %vm140, %v127, 0
    %v154 = vsel %vm140, %v128, 0
    %v157 = vsel %vm140, %v129, 0
    %v160 = vsel %vm140, %v130, 0
    %v163 = vsel %vm140, %v131, 0
    %v166 = vsel %vm140, %v132, 0
    %v169 = vsel %vm140, %v133, 0
    %v172 = vsel %vm140, %v134, 0
    %v175 = vsel %vm140, %v135, 0
    %177 = vmatpush.bf16.msra.mxu0 0
    %178 = vmatpush.bf16.msra.mxu0 0
    %179 = vmatpush.bf16.msra.mxu0 0
    %180 = vmatpush.bf16.msra.mxu0 0
    %181 = vmatpush.bf16.msra.mxu0 0
    %182 = vmatpush.bf16.msra.mxu0 0
    %183 = vmatpush.bf16.msra.mxu0 0
    %184 = vmatpush.bf16.msra.mxu0 %v142
    %185 = vmatmul.bf16.gmra.mxu0 %v138
    %v186 = vpop.f32.mrf.mxu0
    %v187 = vadd.f32 %v64, %v186
    %v188 = vpop.f32.mrf.mxu0
    %189 = vdwg.mxu0
    %190 = vmatpush.bf16.msra.mxu0 0
    %191 = vmatpush.bf16.msra.mxu0 0
    %192 = vmatpush.bf16.msra.mxu0 0
    %193 = vmatpush.bf16.msra.mxu0 0
    %194 = vmatpush.bf16.msra.mxu0 0
    %195 = vmatpush.bf16.msra.mxu0 0
    %196 = vmatpush.bf16.msra.mxu0 0
    %197 = vmatpush.bf16.msra.mxu0 %v145
    %198 = vmatmul.bf16.gmra.mxu0 %v138
    %v199 = vpop.f32.mrf.mxu0
    %v200 = vadd.f32 %v65, %v199
    %v201 = vpop.f32.mrf.mxu0
    %202 = vdwg.mxu0
    %203 = vmatpush.bf16.msra.mxu0 0
    %204 = vmatpush.bf16.msra.mxu0 0
    %205 = vmatpush.bf16.msra.mxu0 0
    %206 = vmatpush.bf16.msra.mxu0 0
    %207 = vmatpush.bf16.msra.mxu0 0
    %208 = vmatpush.bf16.msra.mxu0 0
    %209 = vmatpush.bf16.msra.mxu0 0
    %210 = vmatpush.bf16.msra.mxu0 %v148
    %211 = vmatmul.bf16.gmra.mxu0 %v138
    %v212 = vpop.f32.mrf.mxu0
    %v213 = vadd.f32 %v66, %v212
    %v214 = vpop.f32.mrf.mxu0
    %215 = vdwg.mxu0
    %216 = vmatpush.bf16.msra.mxu0 0
    %217 = vmatpush.bf16.msra.mxu0 0
    %218 = vmatpush.bf16.msra.mxu0 0
    %219 = vmatpush.bf16.msra.mxu0 0
    %220 = vmatpush.bf16.msra.mxu0 0
    %221 = vmatpush.bf16.msra.mxu0 0
    %222 = vmatpush.bf16.msra.mxu0 0
    %223 = vmatpush.bf16.msra.mxu0 %v151
    %224 = vmatmul.bf16.gmra.mxu0 %v138
    %v225 = vpop.f32.mrf.mxu0
    %v226 = vadd.f32 %v67, %v225
    %v227 = vpop.f32.mrf.mxu0
    %228 = vdwg.mxu0
    %229 = vmatpush.bf16.msra.mxu0 0
    %230 = vmatpush.bf16.msra.mxu0 0
    %231 = vmatpush.bf16.msra.mxu0 0
    %232 = vmatpush.bf16.msra.mxu0 0
    %233 = vmatpush.bf16.msra.mxu0 0
    %234 = vmatpush.bf16.msra.mxu0 0
    %235 = vmatpush.bf16.msra.mxu0 0
    %236 = vmatpush.bf16.msra.mxu0 %v154
    %237 = vmatmul.bf16.gmra.mxu0 %v138
    %v238 = vpop.f32.mrf.mxu0
    %v239 = vadd.f32 %v68, %v238
    %v240 = vpop.f32.mrf.mxu0
    %241 = vdwg.mxu0
    %242 = vmatpush.bf16.msra.mxu0 0
    %243 = vmatpush.bf16.msra.mxu0 0
    %244 = vmatpush.bf16.msra.mxu0 0
    %245 = vmatpush.bf16.msra.mxu0 0
    %246 = vmatpush.bf16.msra.mxu0 0
    %247 = vmatpush.bf16.msra.mxu0 0
    %248 = vmatpush.bf16.msra.mxu0 0
    %249 = vmatpush.bf16.msra.mxu0 %v157
    %250 = vmatmul.bf16.gmra.mxu0 %v138
    %v251 = vpop.f32.mrf.mxu0
    %v252 = vadd.f32 %v69, %v251
    %v253 = vpop.f32.mrf.mxu0
    %254 = vdwg.mxu0
    %255 = vmatpush.bf16.msra.mxu0 0
    %256 = vmatpush.bf16.msra.mxu0 0
    %257 = vmatpush.bf16.msra.mxu0 0
    %258 = vmatpush.bf16.msra.mxu0 0
    %259 = vmatpush.bf16.msra.mxu0 0
    %260 = vmatpush.bf16.msra.mxu0 0
    %261 = vmatpush.bf16.msra.mxu0 0
    %262 = vmatpush.bf16.msra.mxu0 %v160
    %263 = vmatmul.bf16.gmra.mxu0 %v138
    %v264 = vpop.f32.mrf.mxu0
    %v265 = vadd.f32 %v70, %v264
    %v266 = vpop.f32.mrf.mxu0
    %267 = vdwg.mxu0
    %268 = vmatpush.bf16.msra.mxu0 0
    %269 = vmatpush.bf16.msra.mxu0 0
    %270 = vmatpush.bf16.msra.mxu0 0
    %271 = vmatpush.bf16.msra.mxu0 0
    %272 = vmatpush.bf16.msra.mxu0 0
    %273 = vmatpush.bf16.msra.mxu0 0
    %274 = vmatpush.bf16.msra.mxu0 0
    %275 = vmatpush.bf16.msra.mxu0 %v163
    %276 = vmatmul.bf16.gmra.mxu0 %v138
    %v277 = vpop.f32.mrf.mxu0
    %v278 = vadd.f32 %v71, %v277
    %v279 = vpop.f32.mrf.mxu0
    %280 = vdwg.mxu0
    %281 = vmatpush.bf16.msra.mxu0 0
    %282 = vmatpush.bf16.msra.mxu0 0
    %283 = vmatpush.bf16.msra.mxu0 0
    %284 = vmatpush.bf16.msra.mxu0 0
    %285 = vmatpush.bf16.msra.mxu0 0
    %286 = vmatpush.bf16.msra.mxu0 0
    %287 = vmatpush.bf16.msra.mxu0 0
    %288 = vmatpush.bf16.msra.mxu0 %v166
    %289 = vmatmul.bf16.gmra.mxu0 %v138
    %v290 = vpop.f32.mrf.mxu0
    %v291 = vadd.f32 %v72, %v290
    %v292 = vpop.f32.mrf.mxu0
    %293 = vdwg.mxu0
    %294 = vmatpush.bf16.msra.mxu0 0
    %295 = vmatpush.bf16.msra.mxu0 0
    %296 = vmatpush.bf16.msra.mxu0 0
    %297 = vmatpush.bf16.msra.mxu0 0
    %298 = vmatpush.bf16.msra.mxu0 0
    %299 = vmatpush.bf16.msra.mxu0 0
    %300 = vmatpush.bf16.msra.mxu0 0
    %301 = vmatpush.bf16.msra.mxu0 %v169
    %302 = vmatmul.bf16.gmra.mxu0 %v138
    %v303 = vpop.f32.mrf.mxu0
    %v304 = vadd.f32 %v73, %v303
    %v305 = vpop.f32.mrf.mxu0
    %306 = vdwg.mxu0
    %307 = vmatpush.bf16.msra.mxu0 0
    %308 = vmatpush.bf16.msra.mxu0 0
    %309 = vmatpush.bf16.msra.mxu0 0
    %310 = vmatpush.bf16.msra.mxu0 0
    %311 = vmatpush.bf16.msra.mxu0 0
    %312 = vmatpush.bf16.msra.mxu0 0
    %313 = vmatpush.bf16.msra.mxu0 0
    %314 = vmatpush.bf16.msra.mxu0 %v172
    %315 = vmatmul.bf16.gmra.mxu0 %v138
    %v316 = vpop.f32.mrf.mxu0
    %v317 = vadd.f32 %v74, %v316
    %v318 = vpop.f32.mrf.mxu0
    %319 = vdwg.mxu0
    %320 = vmatpush.bf16.msra.mxu0 0
    %321 = vmatpush.bf16.msra.mxu0 0
    %322 = vmatpush.bf16.msra.mxu0 0
    %323 = vmatpush.bf16.msra.mxu0 0
    %324 = vmatpush.bf16.msra.mxu0 0
    %325 = vmatpush.bf16.msra.mxu0 0
    %326 = vmatpush.bf16.msra.mxu0 0
    %327 = vmatpush.bf16.msra.mxu0 %v175
    %328 = vmatmul.bf16.gmra.mxu0 %v138
    %v329 = vpop.f32.mrf.mxu0
    %v330 = vadd.f32 %v75, %v329
    %v331 = vpop.f32.mrf.mxu0
    %332 = vdwg.mxu0
    %v333 = vld [vmem:[#allocation2] sm:$0xff]
    %v334 = vld [vmem:[#allocation2 + $0x8] sm:$0xff]
    %v335 = vld [vmem:[#allocation2 + $0x10] sm:$0xff]
    %v336 = vld [vmem:[#allocation2 + $0x18] sm:$0xff]
    %v337 = vld [vmem:[#allocation2 + $0x20] sm:$0xff]
    %v338 = vld [vmem:[#allocation2 + $0x28] sm:$0xff]
    %v339 = vld [vmem:[#allocation2 + $0x30] sm:$0xff]
    %v340 = vld [vmem:[#allocation2 + $0x38] sm:$0xff]
    %v341 = vld [vmem:[#allocation2 + $0x40] sm:$0xff]
    %v342 = vld [vmem:[#allocation2 + $0x48] sm:$0xff]
    %v343 = vld [vmem:[#allocation2 + $0x50] sm:$0xff]
    %v344 = vld [vmem:[#allocation2 + $0x58] sm:$0xff]
    %v345 = vld [vmem:[#allocation2 + $0x60] sm:$0xff]
    %v346 = vld [vmem:[#allocation2 + $0x68] sm:$0xff]
    %v347 = vld [vmem:[#allocation2 + $0x70] sm:$0xff]
    %v348 = vld [vmem:[#allocation2 + $0x78] sm:$0xff]
    %v349 = vld [vmem:[#allocation2 + $0x80] sm:$0xff]
    %v350 = vld [vmem:[#allocation2 + $0x88] sm:$0xff]
    %v351 = vld [vmem:[#allocation2 + $0x90] sm:$0xff]
    %v352 = vld [vmem:[#allocation2 + $0x98] sm:$0xff]
    %v353 = vld [vmem:[#allocation2 + $0xa0] sm:$0xff]
    %v354 = vld [vmem:[#allocation2 + $0xa8] sm:$0xff]
    %v355 = vld [vmem:[#allocation2 + $0xb0] sm:$0xff]
    %v356 = vld [vmem:[#allocation2 + $0xb8] sm:$0xff]
    %v357 = vld [vmem:[#allocation2 + $0xc0] sm:$0xff]
    %v358 = vld [vmem:[#allocation2 + $0xc8] sm:$0xff]
    %v359 = vld [vmem:[#allocation2 + $0xd0] sm:$0xff]
    %v360 = vld [vmem:[#allocation2 + $0xd8] sm:$0xff]
    %v361 = vld [vmem:[#allocation2 + $0xe0] sm:$0xff]
    %v362 = vld [vmem:[#allocation2 + $0xe8] sm:$0xff]
    %v363 = vld [vmem:[#allocation2 + $0xf0] sm:$0xff]
    %v364 = vld [vmem:[#allocation2 + $0xf8] sm:$0xff]
    %v365 = vld [vmem:[#allocation2 + $0x100] sm:$0xff]
    %v366 = vld [vmem:[#allocation2 + $0x108] sm:$0xff]
    %v367 = vld [vmem:[#allocation2 + $0x110] sm:$0xff]
    %v368 = vld [vmem:[#allocation2 + $0x118] sm:$0xff]
    %v369 = vld [vmem:[#allocation2 + $0x120] sm:$0xff]
    %v370 = vld [vmem:[#allocation2 + $0x128] sm:$0xff]
    %v371 = vld [vmem:[#allocation2 + $0x130] sm:$0xff]
    %v372 = vld [vmem:[#allocation2 + $0x138] sm:$0xff]
    %v373 = vld [vmem:[#allocation2 + $0x140] sm:$0xff]
    %v374 = vld [vmem:[#allocation2 + $0x148] sm:$0xff]
    %v375 = vld [vmem:[#allocation2 + $0x150] sm:$0xff]
    %v376 = vld [vmem:[#allocation2 + $0x158] sm:$0xff]
    %v377 = vld [vmem:[#allocation2 + $0x160] sm:$0xff]
    %v378 = vld [vmem:[#allocation2 + $0x168] sm:$0xff]
    %v379 = vld [vmem:[#allocation2 + $0x170] sm:$0xff]
    %v380 = vld [vmem:[#allocation2 + $0x178] sm:$0xff]
    %v381 = vld [vmem:[#allocation2 + $0x180] sm:$0xff]
    %v382 = vld [vmem:[#allocation2 + $0x188] sm:$0xff]
    %v383 = vld [vmem:[#allocation2 + $0x190] sm:$0xff]
    %v384 = vld [vmem:[#allocation2 + $0x198] sm:$0xff]
    %v385 = vld [vmem:[#allocation2 + $0x1a0] sm:$0xff]
    %v386 = vld [vmem:[#allocation2 + $0x1a8] sm:$0xff]
    %v387 = vld [vmem:[#allocation2 + $0x1b0] sm:$0xff]
    %v388 = vld [vmem:[#allocation2 + $0x1b8] sm:$0xff]
    %v389 = vld [vmem:[#allocation2 + $0x1c0] sm:$0xff]
    %v390 = vld [vmem:[#allocation2 + $0x1c8] sm:$0xff]
    %v391 = vld [vmem:[#allocation2 + $0x1d0] sm:$0xff]
    %v392 = vld [vmem:[#allocation2 + $0x1d8] sm:$0xff]
    %v393 = vld [vmem:[#allocation2 + $0x1e0] sm:$0xff]
    %v394 = vld [vmem:[#allocation2 + $0x1e8] sm:$0xff]
    %v395 = vld [vmem:[#allocation2 + $0x1f0] sm:$0xff]
    %v396 = vld [vmem:[#allocation2 + $0x1f8] sm:$0xff]
    %v397 = vld [vmem:[#allocation2 + $0x200] sm:$0xff]
    %v398 = vld [vmem:[#allocation2 + $0x208] sm:$0xff]
    %v399 = vld [vmem:[#allocation2 + $0x210] sm:$0xff]
    %v400 = vld [vmem:[#allocation2 + $0x218] sm:$0xff]
    %v401 = vld [vmem:[#allocation2 + $0x220] sm:$0xff]
    %v402 = vld [vmem:[#allocation2 + $0x228] sm:$0xff]
    %v403 = vld [vmem:[#allocation2 + $0x230] sm:$0xff]
    %v404 = vld [vmem:[#allocation2 + $0x238] sm:$0xff]
    %v405 = vld [vmem:[#allocation2 + $0x240] sm:$0xff]
    %v406 = vld [vmem:[#allocation2 + $0x248] sm:$0xff]
    %v407 = vld [vmem:[#allocation2 + $0x250] sm:$0xff]
    %v408 = vld [vmem:[#allocation2 + $0x258] sm:$0xff]
    %v409 = vld [vmem:[#allocation2 + $0x260] sm:$0xff]
    %v410 = vld [vmem:[#allocation2 + $0x268] sm:$0xff]
    %v411 = vld [vmem:[#allocation2 + $0x270] sm:$0xff]
    %v412 = vld [vmem:[#allocation2 + $0x278] sm:$0xff]
    %v413 = vld [vmem:[#allocation2 + $0x280] sm:$0xff]
    %v414 = vld [vmem:[#allocation2 + $0x288] sm:$0xff]
    %v415 = vld [vmem:[#allocation2 + $0x290] sm:$0xff]
    %v416 = vld [vmem:[#allocation2 + $0x298] sm:$0xff]
    %v417 = vld [vmem:[#allocation2 + $0x2a0] sm:$0xff]
    %v418 = vld [vmem:[#allocation2 + $0x2a8] sm:$0xff]
    %v419 = vld [vmem:[#allocation2 + $0x2b0] sm:$0xff]
    %v420 = vld [vmem:[#allocation2 + $0x2b8] sm:$0xff]
    %v421 = vld [vmem:[#allocation2 + $0x2c0] sm:$0xff]
    %v422 = vld [vmem:[#allocation2 + $0x2c8] sm:$0xff]
    %v423 = vld [vmem:[#allocation2 + $0x2d0] sm:$0xff]
    %v424 = vld [vmem:[#allocation2 + $0x2d8] sm:$0xff]
    %v425 = vld [vmem:[#allocation2 + $0x2e0] sm:$0xff]
    %v426 = vld [vmem:[#allocation2 + $0x2e8] sm:$0xff]
    %v427 = vld [vmem:[#allocation2 + $0x2f0] sm:$0xff]
    %v428 = vld [vmem:[#allocation2 + $0x2f8] sm:$0xff]
    %v429 = vld [vmem:[#allocation2 + $0x300] sm:$0xff]
    %v430 = vld [vmem:[#allocation2 + $0x308] sm:$0xff]
    %v431 = vld [vmem:[#allocation2 + $0x310] sm:$0xff]
    %v432 = vld [vmem:[#allocation2 + $0x318] sm:$0xff]
    %v433 = vld [vmem:[#allocation2 + $0x320] sm:$0xff]
    %v434 = vld [vmem:[#allocation2 + $0x328] sm:$0xff]
    %v435 = vld [vmem:[#allocation2 + $0x330] sm:$0xff]
    %v436 = vld [vmem:[#allocation2 + $0x338] sm:$0xff]
    %v437 = vld [vmem:[#allocation2 + $0x340] sm:$0xff]
    %v438 = vld [vmem:[#allocation2 + $0x348] sm:$0xff]
    %v439 = vld [vmem:[#allocation2 + $0x350] sm:$0xff]
    %v440 = vld [vmem:[#allocation2 + $0x358] sm:$0xff]
    %v441 = vld [vmem:[#allocation2 + $0x360] sm:$0xff]
    %v442 = vld [vmem:[#allocation2 + $0x368] sm:$0xff]
    %v443 = vld [vmem:[#allocation2 + $0x370] sm:$0xff]
    %v444 = vld [vmem:[#allocation2 + $0x378] sm:$0xff]
    %v445 = vld [vmem:[#allocation2 + $0x380] sm:$0xff]
    %v446 = vld [vmem:[#allocation2 + $0x388] sm:$0xff]
    %v447 = vld [vmem:[#allocation2 + $0x390] sm:$0xff]
    %v448 = vld [vmem:[#allocation2 + $0x398] sm:$0xff]
    %v449 = vld [vmem:[#allocation2 + $0x3a0] sm:$0xff]
    %v450 = vld [vmem:[#allocation2 + $0x3a8] sm:$0xff]
    %v451 = vld [vmem:[#allocation2 + $0x3b0] sm:$0xff]
    %v452 = vld [vmem:[#allocation2 + $0x3b8] sm:$0xff]
    %v453 = vld [vmem:[#allocation2 + $0x3c0] sm:$0xff]
    %v454 = vld [vmem:[#allocation2 + $0x3c8] sm:$0xff]
    %v455 = vld [vmem:[#allocation2 + $0x3d0] sm:$0xff]
    %v456 = vld [vmem:[#allocation2 + $0x3d8] sm:$0xff]
    %v457 = vld [vmem:[#allocation2 + $0x3e0] sm:$0xff]
    %v458 = vld [vmem:[#allocation2 + $0x3e8] sm:$0xff]
    %v459 = vld [vmem:[#allocation2 + $0x3f0] sm:$0xff]
    %v460 = vld [vmem:[#allocation2 + $0x3f8] sm:$0xff]
    %v461 = vld [vmem:[#allocation2 + $0x400] sm:$0xff]
    %v462 = vld [vmem:[#allocation2 + $0x408] sm:$0xff]
    %v463 = vld [vmem:[#allocation2 + $0x410] sm:$0xff]
    %v464 = vld [vmem:[#allocation2 + $0x418] sm:$0xff]
    %v465 = vld [vmem:[#allocation2 + $0x420] sm:$0xff]
    %v466 = vld [vmem:[#allocation2 + $0x428] sm:$0xff]
    %v467 = vld [vmem:[#allocation2 + $0x430] sm:$0xff]
    %v468 = vld [vmem:[#allocation2 + $0x438] sm:$0xff]
    %v469 = vld [vmem:[#allocation2 + $0x440] sm:$0xff]
    %v470 = vld [vmem:[#allocation2 + $0x448] sm:$0xff]
    %v471 = vld [vmem:[#allocation2 + $0x450] sm:$0xff]
    %v472 = vld [vmem:[#allocation2 + $0x458] sm:$0xff]
    %v473 = vld [vmem:[#allocation2 + $0x460] sm:$0xff]
    %v474 = vld [vmem:[#allocation2 + $0x468] sm:$0xff]
    %v475 = vld [vmem:[#allocation2 + $0x470] sm:$0xff]
    %v476 = vld [vmem:[#allocation2 + $0x478] sm:$0xff]
    %v477 = vld [vmem:[#allocation2 + $0x480] sm:$0xff]
    %v478 = vld [vmem:[#allocation2 + $0x488] sm:$0xff]
    %v479 = vld [vmem:[#allocation2 + $0x490] sm:$0xff]
    %v480 = vld [vmem:[#allocation2 + $0x498] sm:$0xff]
    %v481 = vld [vmem:[#allocation2 + $0x4a0] sm:$0xff]
    %v482 = vld [vmem:[#allocation2 + $0x4a8] sm:$0xff]
    %v483 = vld [vmem:[#allocation2 + $0x4b0] sm:$0xff]
    %v484 = vld [vmem:[#allocation2 + $0x4b8] sm:$0xff]
    %v485 = vld [vmem:[#allocation2 + $0x4c0] sm:$0xff]
    %v486 = vld [vmem:[#allocation2 + $0x4c8] sm:$0xff]
    %v487 = vld [vmem:[#allocation2 + $0x4d0] sm:$0xff]
    %v488 = vld [vmem:[#allocation2 + $0x4d8] sm:$0xff]
    %v645 = vunpack.c.l.b16 %v333
    %v646 = vunpack.c.h.b16 %v333
    %v647 = vunpack.c.l.b16 %v334
    %v648 = vunpack.c.h.b16 %v334
    %v649 = vunpack.c.l.b16 %v335
    %v650 = vunpack.c.h.b16 %v335
    %v651 = vunpack.c.l.b16 %v336
    %v652 = vunpack.c.h.b16 %v336
    %v653 = vunpack.c.l.b16 %v337
    %v654 = vunpack.c.h.b16 %v337
    %v655 = vunpack.c.l.b16 %v338
    %v656 = vunpack.c.h.b16 %v338
    %v657 = vunpack.c.l.b16 %v339
    %v658 = vunpack.c.h.b16 %v339
    %v659 = vunpack.c.l.b16 %v340
    %v660 = vunpack.c.h.b16 %v340
    %v661 = vunpack.c.l.b16 %v341
    %v662 = vunpack.c.h.b16 %v341
    %v663 = vunpack.c.l.b16 %v342
    %v664 = vunpack.c.h.b16 %v342
    %v665 = vunpack.c.l.b16 %v343
    %v666 = vunpack.c.h.b16 %v343
    %v667 = vunpack.c.l.b16 %v344
    %v668 = vunpack.c.h.b16 %v344
    %v669 = vunpack.c.l.b16 %v345
    %v670 = vunpack.c.h.b16 %v345
    %v671 = vunpack.c.l.b16 %v346
    %v672 = vunpack.c.h.b16 %v346
    %v673 = vunpack.c.l.b16 %v347
    %v674 = vunpack.c.h.b16 %v347
    %v675 = vunpack.c.l.b16 %v348
    %v676 = vunpack.c.h.b16 %v348
    %v677 = vunpack.c.l.b16 %v349
    %v678 = vunpack.c.h.b16 %v349
    %v679 = vunpack.c.l.b16 %v350
    %v680 = vunpack.c.h.b16 %v350
    %v681 = vunpack.c.l.b16 %v351
    %v682 = vunpack.c.h.b16 %v351
    %v683 = vunpack.c.l.b16 %v352
    %v684 = vunpack.c.h.b16 %v352
    %v685 = vunpack.c.l.b16 %v353
    %v686 = vunpack.c.h.b16 %v353
    %v687 = vunpack.c.l.b16 %v354
    %v688 = vunpack.c.h.b16 %v354
    %v689 = vunpack.c.l.b16 %v355
    %v690 = vunpack.c.h.b16 %v355
    %v691 = vunpack.c.l.b16 %v356
    %v692 = vunpack.c.h.b16 %v356
    %v693 = vunpack.c.l.b16 %v357
    %v694 = vunpack.c.h.b16 %v357
    %v695 = vunpack.c.l.b16 %v358
    %v696 = vunpack.c.h.b16 %v358
    %v697 = vunpack.c.l.b16 %v359
    %v698 = vunpack.c.h.b16 %v359
    %v699 = vunpack.c.l.b16 %v360
    %v700 = vunpack.c.h.b16 %v360
    %v701 = vunpack.c.l.b16 %v361
    %v702 = vunpack.c.h.b16 %v361
    %v703 = vunpack.c.l.b16 %v362
    %v704 = vunpack.c.h.b16 %v362
    %v705 = vunpack.c.l.b16 %v363
    %v706 = vunpack.c.h.b16 %v363
    %v707 = vunpack.c.l.b16 %v364
    %v708 = vunpack.c.h.b16 %v364
    %v709 = vunpack.c.l.b16 %v365
    %v710 = vunpack.c.h.b16 %v365
    %v711 = vunpack.c.l.b16 %v366
    %v712 = vunpack.c.h.b16 %v366
    %v713 = vunpack.c.l.b16 %v367
    %v714 = vunpack.c.h.b16 %v367
    %v715 = vunpack.c.l.b16 %v368
    %v716 = vunpack.c.h.b16 %v368
    %v717 = vunpack.c.l.b16 %v369
    %v718 = vunpack.c.h.b16 %v369
    %v719 = vunpack.c.l.b16 %v370
    %v720 = vunpack.c.h.b16 %v370
    %v721 = vunpack.c.l.b16 %v371
    %v722 = vunpack.c.h.b16 %v371
    %v723 = vunpack.c.l.b16 %v372
    %v724 = vunpack.c.h.b16 %v372
    %v725 = vunpack.c.l.b16 %v373
    %v726 = vunpack.c.h.b16 %v373
    %v727 = vunpack.c.l.b16 %v374
    %v728 = vunpack.c.h.b16 %v374
    %v729 = vunpack.c.l.b16 %v375
    %v730 = vunpack.c.h.b16 %v375
    %v731 = vunpack.c.l.b16 %v376
    %v732 = vunpack.c.h.b16 %v376
    %v733 = vunpack.c.l.b16 %v377
    %v734 = vunpack.c.h.b16 %v377
    %v735 = vunpack.c.l.b16 %v378
    %v736 = vunpack.c.h.b16 %v378
    %v737 = vunpack.c.l.b16 %v379
    %v738 = vunpack.c.h.b16 %v379
    %v739 = vunpack.c.l.b16 %v380
    %v740 = vunpack.c.h.b16 %v380
    %v741 = vunpack.c.l.b16 %v381
    %v742 = vunpack.c.h.b16 %v381
    %v743 = vunpack.c.l.b16 %v382
    %v744 = vunpack.c.h.b16 %v382
    %v745 = vunpack.c.l.b16 %v383
    %v746 = vunpack.c.h.b16 %v383
    %v747 = vunpack.c.l.b16 %v384
    %v748 = vunpack.c.h.b16 %v384
    %v749 = vunpack.c.l.b16 %v385
    %v750 = vunpack.c.h.b16 %v385
    %v751 = vunpack.c.l.b16 %v386
    %v752 = vunpack.c.h.b16 %v386
    %v753 = vunpack.c.l.b16 %v387
    %v754 = vunpack.c.h.b16 %v387
    %v755 = vunpack.c.l.b16 %v388
    %v756 = vunpack.c.h.b16 %v388
    %v757 = vunpack.c.l.b16 %v389
    %v758 = vunpack.c.h.b16 %v389
    %v759 = vunpack.c.l.b16 %v390
    %v760 = vunpack.c.h.b16 %v390
    %v761 = vunpack.c.l.b16 %v391
    %v762 = vunpack.c.h.b16 %v391
    %v763 = vunpack.c.l.b16 %v392
    %v764 = vunpack.c.h.b16 %v392
    %v765 = vunpack.c.l.b16 %v393
    %v766 = vunpack.c.h.b16 %v393
    %v767 = vunpack.c.l.b16 %v394
    %v768 = vunpack.c.h.b16 %v394
    %v769 = vunpack.c.l.b16 %v395
    %v770 = vunpack.c.h.b16 %v395
    %v771 = vunpack.c.l.b16 %v396
    %v772 = vunpack.c.h.b16 %v396
    %v773 = vunpack.c.l.b16 %v397
    %v774 = vunpack.c.h.b16 %v397
    %v775 = vunpack.c.l.b16 %v398
    %v776 = vunpack.c.h.b16 %v398
    %v777 = vunpack.c.l.b16 %v399
    %v778 = vunpack.c.h.b16 %v399
    %v779 = vunpack.c.l.b16 %v400
    %v780 = vunpack.c.h.b16 %v400
    %v781 = vunpack.c.l.b16 %v401
    %v782 = vunpack.c.h.b16 %v401
    %v783 = vunpack.c.l.b16 %v402
    %v784 = vunpack.c.h.b16 %v402
    %v785 = vunpack.c.l.b16 %v403
    %v786 = vunpack.c.h.b16 %v403
    %v787 = vunpack.c.l.b16 %v404
    %v788 = vunpack.c.h.b16 %v404
    %v789 = vunpack.c.l.b16 %v405
    %v790 = vunpack.c.h.b16 %v405
    %v791 = vunpack.c.l.b16 %v406
    %v792 = vunpack.c.h.b16 %v406
    %v793 = vunpack.c.l.b16 %v407
    %v794 = vunpack.c.h.b16 %v407
    %v795 = vunpack.c.l.b16 %v408
    %v796 = vunpack.c.h.b16 %v408
    %v797 = vunpack.c.l.b16 %v409
    %v798 = vunpack.c.h.b16 %v409
    %v799 = vunpack.c.l.b16 %v410
    %v800 = vunpack.c.h.b16 %v410
    %v801 = vunpack.c.l.b16 %v411
    %v802 = vunpack.c.h.b16 %v411
    %v803 = vunpack.c.l.b16 %v412
    %v804 = vunpack.c.h.b16 %v412
    %v805 = vunpack.c.l.b16 %v413
    %v806 = vunpack.c.h.b16 %v413
    %v807 = vunpack.c.l.b16 %v414
    %v808 = vunpack.c.h.b16 %v414
    %v809 = vunpack.c.l.b16 %v415
    %v810 = vunpack.c.h.b16 %v415
    %v811 = vunpack.c.l.b16 %v416
    %v812 = vunpack.c.h.b16 %v416
    %v813 = vunpack.c.l.b16 %v417
    %v814 = vunpack.c.h.b16 %v417
    %v815 = vunpack.c.l.b16 %v418
    %v816 = vunpack.c.h.b16 %v418
    %v817 = vunpack.c.l.b16 %v419
    %v818 = vunpack.c.h.b16 %v419
    %v819 = vunpack.c.l.b16 %v420
    %v820 = vunpack.c.h.b16 %v420
    %v821 = vunpack.c.l.b16 %v421
    %v822 = vunpack.c.h.b16 %v421
    %v823 = vunpack.c.l.b16 %v422
    %v824 = vunpack.c.h.b16 %v422
    %v825 = vunpack.c.l.b16 %v423
    %v826 = vunpack.c.h.b16 %v423
    %v827 = vunpack.c.l.b16 %v424
    %v828 = vunpack.c.h.b16 %v424
    %v829 = vunpack.c.l.b16 %v425
    %v830 = vunpack.c.h.b16 %v425
    %v831 = vunpack.c.l.b16 %v426
    %v832 = vunpack.c.h.b16 %v426
    %v833 = vunpack.c.l.b16 %v427
    %v834 = vunpack.c.h.b16 %v427
    %v835 = vunpack.c.l.b16 %v428
    %v836 = vunpack.c.h.b16 %v428
    %v837 = vunpack.c.l.b16 %v429
    %v838 = vunpack.c.h.b16 %v429
    %v839 = vunpack.c.l.b16 %v430
    %v840 = vunpack.c.h.b16 %v430
    %v841 = vunpack.c.l.b16 %v431
    %v842 = vunpack.c.h.b16 %v431
    %v843 = vunpack.c.l.b16 %v432
    %v844 = vunpack.c.h.b16 %v432
    %v845 = vunpack.c.l.b16 %v433
    %v846 = vunpack.c.h.b16 %v433
    %v847 = vunpack.c.l.b16 %v434
    %v848 = vunpack.c.h.b16 %v434
    %v849 = vunpack.c.l.b16 %v435
    %v850 = vunpack.c.h.b16 %v435
    %v851 = vunpack.c.l.b16 %v436
    %v852 = vunpack.c.h.b16 %v436
    %v853 = vunpack.c.l.b16 %v437
    %v854 = vunpack.c.h.b16 %v437
    %v855 = vunpack.c.l.b16 %v438
    %v856 = vunpack.c.h.b16 %v438
    %v857 = vunpack.c.l.b16 %v439
    %v858 = vunpack.c.h.b16 %v439
    %v859 = vunpack.c.l.b16 %v440
    %v860 = vunpack.c.h.b16 %v440
    %v861 = vunpack.c.l.b16 %v441
    %v862 = vunpack.c.h.b16 %v441
    %v863 = vunpack.c.l.b16 %v442
    %v864 = vunpack.c.h.b16 %v442
    %v865 = vunpack.c.l.b16 %v443
    %v866 = vunpack.c.h.b16 %v443
    %v867 = vunpack.c.l.b16 %v444
    %v868 = vunpack.c.h.b16 %v444
    %v869 = vunpack.c.l.b16 %v445
    %v870 = vunpack.c.h.b16 %v445
    %v871 = vunpack.c.l.b16 %v446
    %v872 = vunpack.c.h.b16 %v446
    %v873 = vunpack.c.l.b16 %v447
    %v874 = vunpack.c.h.b16 %v447
    %v875 = vunpack.c.l.b16 %v448
    %v876 = vunpack.c.h.b16 %v448
    %v877 = vunpack.c.l.b16 %v449
    %v878 = vunpack.c.h.b16 %v449
    %v879 = vunpack.c.l.b16 %v450
    %v880 = vunpack.c.h.b16 %v450
    %v881 = vunpack.c.l.b16 %v451
    %v882 = vunpack.c.h.b16 %v451
    %v883 = vunpack.c.l.b16 %v452
    %v884 = vunpack.c.h.b16 %v452
    %v885 = vunpack.c.l.b16 %v453
    %v886 = vunpack.c.h.b16 %v453
    %v887 = vunpack.c.l.b16 %v454
    %v888 = vunpack.c.h.b16 %v454
    %v889 = vunpack.c.l.b16 %v455
    %v890 = vunpack.c.h.b16 %v455
    %v891 = vunpack.c.l.b16 %v456
    %v892 = vunpack.c.h.b16 %v456
    %v893 = vunpack.c.l.b16 %v457
    %v894 = vunpack.c.h.b16 %v457
    %v895 = vunpack.c.l.b16 %v458
    %v896 = vunpack.c.h.b16 %v458
    %v897 = vunpack.c.l.b16 %v459
    %v898 = vunpack.c.h.b16 %v459
    %v899 = vunpack.c.l.b16 %v460
    %v900 = vunpack.c.h.b16 %v460
    %v901 = vunpack.c.l.b16 %v461
    %v902 = vunpack.c.h.b16 %v461
    %v903 = vunpack.c.l.b16 %v462
    %v904 = vunpack.c.h.b16 %v462
    %v905 = vunpack.c.l.b16 %v463
    %v906 = vunpack.c.h.b16 %v463
    %v907 = vunpack.c.l.b16 %v464
    %v908 = vunpack.c.h.b16 %v464
    %v909 = vunpack.c.l.b16 %v465
    %v910 = vunpack.c.h.b16 %v465
    %v911 = vunpack.c.l.b16 %v466
    %v912 = vunpack.c.h.b16 %v466
    %v913 = vunpack.c.l.b16 %v467
    %v914 = vunpack.c.h.b16 %v467
    %v915 = vunpack.c.l.b16 %v468
    %v916 = vunpack.c.h.b16 %v468
    %v917 = vunpack.c.l.b16 %v469
    %v918 = vunpack.c.h.b16 %v469
    %v919 = vunpack.c.l.b16 %v470
    %v920 = vunpack.c.h.b16 %v470
    %v921 = vunpack.c.l.b16 %v471
    %v922 = vunpack.c.h.b16 %v471
    %v923 = vunpack.c.l.b16 %v472
    %v924 = vunpack.c.h.b16 %v472
    %v925 = vunpack.c.l.b16 %v473
    %v926 = vunpack.c.h.b16 %v473
    %v927 = vunpack.c.l.b16 %v474
    %v928 = vunpack.c.h.b16 %v474
    %v929 = vunpack.c.l.b16 %v475
    %v930 = vunpack.c.h.b16 %v475
    %v931 = vunpack.c.l.b16 %v476
    %v932 = vunpack.c.h.b16 %v476
    %v933 = vunpack.c.l.b16 %v477
    %v934 = vunpack.c.h.b16 %v477
    %v935 = vunpack.c.l.b16 %v478
    %v936 = vunpack.c.h.b16 %v478
    %v937 = vunpack.c.l.b16 %v479
    %v938 = vunpack.c.h.b16 %v479
    %v939 = vunpack.c.l.b16 %v480
    %v940 = vunpack.c.h.b16 %v480
    %v941 = vunpack.c.l.b16 %v481
    %v942 = vunpack.c.h.b16 %v481
    %v943 = vunpack.c.l.b16 %v482
    %v944 = vunpack.c.h.b16 %v482
    %v945 = vunpack.c.l.b16 %v483
    %v946 = vunpack.c.h.b16 %v483
    %v947 = vunpack.c.l.b16 %v484
    %v948 = vunpack.c.h.b16 %v484
    %v949 = vunpack.c.l.b16 %v485
    %v950 = vunpack.c.h.b16 %v485
    %v951 = vunpack.c.l.b16 %v486
    %v952 = vunpack.c.h.b16 %v486
    %v953 = vunpack.c.l.b16 %v487
    %v954 = vunpack.c.h.b16 %v487
    %v955 = vunpack.c.l.b16 %v488
    %v956 = vunpack.c.h.b16 %v488
    %v957 = vpack.c.b16 %v657, %v645
    %v958 = vpack.c.b16 %v658, %v646
    %v959 = vpack.c.b16 %v659, %v647
    %v960 = vpack.c.b16 %v660, %v648
    %v961 = vpack.c.b16 %v661, %v649
    %v962 = vpack.c.b16 %v662, %v650
    %v963 = vpack.c.b16 %v663, %v651
    %v964 = vpack.c.b16 %v664, %v652
    %v965 = vpack.c.b16 %v665, %v653
    %v966 = vpack.c.b16 %v666, %v654
    %v967 = vpack.c.b16 %v667, %v655
    %v968 = vpack.c.b16 %v668, %v656
    %v969 = vpack.c.b16 %v681, %v669
    %v970 = vpack.c.b16 %v682, %v670
    %v971 = vpack.c.b16 %v683, %v671
    %v972 = vpack.c.b16 %v684, %v672
    %v973 = vpack.c.b16 %v685, %v673
    %v974 = vpack.c.b16 %v686, %v674
    %v975 = vpack.c.b16 %v687, %v675
    %v976 = vpack.c.b16 %v688, %v676
    %v977 = vpack.c.b16 %v689, %v677
    %v978 = vpack.c.b16 %v690, %v678
    %v979 = vpack.c.b16 %v691, %v679
    %v980 = vpack.c.b16 %v692, %v680
    %v981 = vpack.c.b16 %v705, %v693
    %v982 = vpack.c.b16 %v706, %v694
    %v983 = vpack.c.b16 %v707, %v695
    %v984 = vpack.c.b16 %v708, %v696
    %v985 = vpack.c.b16 %v709, %v697
    %v986 = vpack.c.b16 %v710, %v698
    %v987 = vpack.c.b16 %v711, %v699
    %v988 = vpack.c.b16 %v712, %v700
    %v989 = vpack.c.b16 %v713, %v701
    %v990 = vpack.c.b16 %v714, %v702
    %v991 = vpack.c.b16 %v715, %v703
    %v992 = vpack.c.b16 %v716, %v704
    %v993 = vpack.c.b16 %v729, %v717
    %v994 = vpack.c.b16 %v730, %v718
    %v995 = vpack.c.b16 %v731, %v719
    %v996 = vpack.c.b16 %v732, %v720
    %v997 = vpack.c.b16 %v733, %v721
    %v998 = vpack.c.b16 %v734, %v722
    %v999 = vpack.c.b16 %v735, %v723
    %v1000 = vpack.c.b16 %v736, %v724
    %v1001 = vpack.c.b16 %v737, %v725
    %v1002 = vpack.c.b16 %v738, %v726
    %v1003 = vpack.c.b16 %v739, %v727
    %v1004 = vpack.c.b16 %v740, %v728
    %v1005 = vpack.c.b16 %v753, %v741
    %v1006 = vpack.c.b16 %v754, %v742
    %v1007 = vpack.c.b16 %v755, %v743
    %v1008 = vpack.c.b16 %v756, %v744
    %v1009 = vpack.c.b16 %v757, %v745
    %v1010 = vpack.c.b16 %v758, %v746
    %v1011 = vpack.c.b16 %v759, %v747
    %v1012 = vpack.c.b16 %v760, %v748
    %v1013 = vpack.c.b16 %v761, %v749
    %v1014 = vpack.c.b16 %v762, %v750
    %v1015 = vpack.c.b16 %v763, %v751
    %v1016 = vpack.c.b16 %v764, %v752
    %v1017 = vpack.c.b16 %v777, %v765
    %v1018 = vpack.c.b16 %v778, %v766
    %v1019 = vpack.c.b16 %v779, %v767
    %v1020 = vpack.c.b16 %v780, %v768
    %v1021 = vpack.c.b16 %v781, %v769
    %v1022 = vpack.c.b16 %v782, %v770
    %v1023 = vpack.c.b16 %v783, %v771
    %v1024 = vpack.c.b16 %v784, %v772
    %v1025 = vpack.c.b16 %v785, %v773
    %v1026 = vpack.c.b16 %v786, %v774
    %v1027 = vpack.c.b16 %v787, %v775
    %v1028 = vpack.c.b16 %v788, %v776
    %v1029 = vpack.c.b16 %v801, %v789
    %v1030 = vpack.c.b16 %v802, %v790
    %v1031 = vpack.c.b16 %v803, %v791
    %v1032 = vpack.c.b16 %v804, %v792
    %v1033 = vpack.c.b16 %v805, %v793
    %v1034 = vpack.c.b16 %v806, %v794
    %v1035 = vpack.c.b16 %v807, %v795
    %v1036 = vpack.c.b16 %v808, %v796
    %v1037 = vpack.c.b16 %v809, %v797
    %v1038 = vpack.c.b16 %v810, %v798
    %v1039 = vpack.c.b16 %v811, %v799
    %v1040 = vpack.c.b16 %v812, %v800
    %v1041 = vpack.c.b16 %v825, %v813
    %v1042 = vpack.c.b16 %v826, %v814
    %v1043 = vpack.c.b16 %v827, %v815
    %v1044 = vpack.c.b16 %v828, %v816
    %v1045 = vpack.c.b16 %v829, %v817
    %v1046 = vpack.c.b16 %v830, %v818
    %v1047 = vpack.c.b16 %v831, %v819
    %v1048 = vpack.c.b16 %v832, %v820
    %v1049 = vpack.c.b16 %v833, %v821
    %v1050 = vpack.c.b16 %v834, %v822
    %v1051 = vpack.c.b16 %v835, %v823
    %v1052 = vpack.c.b16 %v836, %v824
    %v1053 = vpack.c.b16 %v849, %v837
    %v1054 = vpack.c.b16 %v850, %v838
    %v1055 = vpack.c.b16 %v851, %v839
    %v1056 = vpack.c.b16 %v852, %v840
    %v1057 = vpack.c.b16 %v853, %v841
    %v1058 = vpack.c.b16 %v854, %v842
    %v1059 = vpack.c.b16 %v855, %v843
    %v1060 = vpack.c.b16 %v856, %v844
    %v1061 = vpack.c.b16 %v857, %v845
    %v1062 = vpack.c.b16 %v858, %v846
    %v1063 = vpack.c.b16 %v859, %v847
    %v1064 = vpack.c.b16 %v860, %v848
    %v1065 = vpack.c.b16 %v873, %v861
    %v1066 = vpack.c.b16 %v874, %v862
    %v1067 = vpack.c.b16 %v875, %v863
    %v1068 = vpack.c.b16 %v876, %v864
    %v1069 = vpack.c.b16 %v877, %v865
    %v1070 = vpack.c.b16 %v878, %v866
    %v1071 = vpack.c.b16 %v879, %v867
    %v1072 = vpack.c.b16 %v880, %v868
    %v1073 = vpack.c.b16 %v881, %v869
    %v1074 = vpack.c.b16 %v882, %v870
    %v1075 = vpack.c.b16 %v883, %v871
    %v1076 = vpack.c.b16 %v884, %v872
    %v1077 = vpack.c.b16 %v897, %v885
    %v1078 = vpack.c.b16 %v898, %v886
    %v1079 = vpack.c.b16 %v899, %v887
    %v1080 = vpack.c.b16 %v900, %v888
    %v1081 = vpack.c.b16 %v901, %v889
    %v1082 = vpack.c.b16 %v902, %v890
    %v1083 = vpack.c.b16 %v903, %v891
    %v1084 = vpack.c.b16 %v904, %v892
    %v1085 = vpack.c.b16 %v905, %v893
    %v1086 = vpack.c.b16 %v906, %v894
    %v1087 = vpack.c.b16 %v907, %v895
    %v1088 = vpack.c.b16 %v908, %v896
    %v1089 = vpack.c.b16 %v921, %v909
    %v1090 = vpack.c.b16 %v922, %v910
    %v1091 = vpack.c.b16 %v923, %v911
    %v1092 = vpack.c.b16 %v924, %v912
    %v1093 = vpack.c.b16 %v925, %v913
    %v1094 = vpack.c.b16 %v926, %v914
    %v1095 = vpack.c.b16 %v927, %v915
    %v1096 = vpack.c.b16 %v928, %v916
    %v1097 = vpack.c.b16 %v929, %v917
    %v1098 = vpack.c.b16 %v930, %v918
    %v1099 = vpack.c.b16 %v931, %v919
    %v1100 = vpack.c.b16 %v932, %v920
    %v1101 = vpack.c.b16 %v945, %v933
    %v1102 = vpack.c.b16 %v946, %v934
    %v1103 = vpack.c.b16 %v947, %v935
    %v1104 = vpack.c.b16 %v948, %v936
    %v1105 = vpack.c.b16 %v949, %v937
    %v1106 = vpack.c.b16 %v950, %v938
    %v1107 = vpack.c.b16 %v951, %v939
    %v1108 = vpack.c.b16 %v952, %v940
    %v1109 = vpack.c.b16 %v953, %v941
    %v1110 = vpack.c.b16 %v954, %v942
    %v1111 = vpack.c.b16 %v955, %v943
    %v1112 = vpack.c.b16 %v956, %v944
    %vm1269 = vcmask 654336
    %v1271 = vsel %vm1269, %v47, 0
    %1273 = vmatpush.bf16.msra.mxu0 %v1041
    %1274 = vmatpush.bf16.msra.mxu0 %v1029
    %1275 = vmatpush.bf16.msra.mxu0 %v1017
    %1276 = vmatpush.bf16.msra.mxu0 %v1005
    %1277 = vmatpush.bf16.msra.mxu0 %v993
    %1278 = vmatpush.bf16.msra.mxu0 %v981
    %1279 = vmatpush.bf16.msra.mxu0 %v969
    %1280 = vmatpush.bf16.msra.mxu0 %v957
    %1281 = vmatmul.bf16.gmra.mxu0 %v46
    %v1282 = vpop.f32.mrf.mxu0
    %v1283 = vadd.f32 0.0, %v1282
    %v1284 = vpop.f32.mrf.mxu0
    %1285 = vdwg.mxu0
    %1286 = vmatpush.bf16.msra.mxu0 0
    %1287 = vmatpush.bf16.msra.mxu0 0
    %1288 = vmatpush.bf16.msra.mxu0 0
    %1289 = vmatpush.bf16.msra.mxu0 %v1101
    %1290 = vmatpush.bf16.msra.mxu0 %v1089
    %1291 = vmatpush.bf16.msra.mxu0 %v1077
    %1292 = vmatpush.bf16.msra.mxu0 %v1065
    %1293 = vmatpush.bf16.msra.mxu0 %v1053
    %1294 = vmatmul.bf16.gmra.mxu0 %v1271
    %v1295 = vpop.f32.mrf.mxu0
    %v1296 = vadd.f32 %v1283, %v1295
    %v1297 = vpop.f32.mrf.mxu0
    %1298 = vdwg.mxu0
    %1299 = vmatpush.bf16.msra.mxu0 %v1042
    %1300 = vmatpush.bf16.msra.mxu0 %v1030
    %1301 = vmatpush.bf16.msra.mxu0 %v1018
    %1302 = vmatpush.bf16.msra.mxu0 %v1006
    %1303 = vmatpush.bf16.msra.mxu0 %v994
    %1304 = vmatpush.bf16.msra.mxu0 %v982
    %1305 = vmatpush.bf16.msra.mxu0 %v970
    %1306 = vmatpush.bf16.msra.mxu0 %v958
    %1307 = vmatmul.bf16.gmra.mxu0 %v46
    %v1308 = vpop.f32.mrf.mxu0
    %v1309 = vadd.f32 0.0, %v1308
    %v1310 = vpop.f32.mrf.mxu0
    %1311 = vdwg.mxu0
    %1312 = vmatpush.bf16.msra.mxu0 0
    %1313 = vmatpush.bf16.msra.mxu0 0
    %1314 = vmatpush.bf16.msra.mxu0 0
    %1315 = vmatpush.bf16.msra.mxu0 %v1102
    %1316 = vmatpush.bf16.msra.mxu0 %v1090
    %1317 = vmatpush.bf16.msra.mxu0 %v1078
    %1318 = vmatpush.bf16.msra.mxu0 %v1066
    %1319 = vmatpush.bf16.msra.mxu0 %v1054
    %1320 = vmatmul.bf16.gmra.mxu0 %v1271
    %v1321 = vpop.f32.mrf.mxu0
    %v1322 = vadd.f32 %v1309, %v1321
    %v1323 = vpop.f32.mrf.mxu0
    %1324 = vdwg.mxu0
    %1325 = vmatpush.bf16.msra.mxu0 %v1043
    %1326 = vmatpush.bf16.msra.mxu0 %v1031
    %1327 = vmatpush.bf16.msra.mxu0 %v1019
    %1328 = vmatpush.bf16.msra.mxu0 %v1007
    %1329 = vmatpush.bf16.msra.mxu0 %v995
    %1330 = vmatpush.bf16.msra.mxu0 %v983
    %1331 = vmatpush.bf16.msra.mxu0 %v971
    %1332 = vmatpush.bf16.msra.mxu0 %v959
    %1333 = vmatmul.bf16.gmra.mxu0 %v46
    %v1334 = vpop.f32.mrf.mxu0
    %v1335 = vadd.f32 0.0, %v1334
    %v1336 = vpop.f32.mrf.mxu0
    %1337 = vdwg.mxu0
    %1338 = vmatpush.bf16.msra.mxu0 0
    %1339 = vmatpush.bf16.msra.mxu0 0
    %1340 = vmatpush.bf16.msra.mxu0 0
    %1341 = vmatpush.bf16.msra.mxu0 %v1103
    %1342 = vmatpush.bf16.msra.mxu0 %v1091
    %1343 = vmatpush.bf16.msra.mxu0 %v1079
    %1344 = vmatpush.bf16.msra.mxu0 %v1067
    %1345 = vmatpush.bf16.msra.mxu0 %v1055
    %1346 = vmatmul.bf16.gmra.mxu0 %v1271
    %v1347 = vpop.f32.mrf.mxu0
    %v1348 = vadd.f32 %v1335, %v1347
    %v1349 = vpop.f32.mrf.mxu0
    %1350 = vdwg.mxu0
    %1351 = vmatpush.bf16.msra.mxu0 %v1044
    %1352 = vmatpush.bf16.msra.mxu0 %v1032
    %1353 = vmatpush.bf16.msra.mxu0 %v1020
    %1354 = vmatpush.bf16.msra.mxu0 %v1008
    %1355 = vmatpush.bf16.msra.mxu0 %v996
    %1356 = vmatpush.bf16.msra.mxu0 %v984
    %1357 = vmatpush.bf16.msra.mxu0 %v972
    %1358 = vmatpush.bf16.msra.mxu0 %v960
    %1359 = vmatmul.bf16.gmra.mxu0 %v46
    %v1360 = vpop.f32.mrf.mxu0
    %v1361 = vadd.f32 0.0, %v1360
    %v1362 = vpop.f32.mrf.mxu0
    %1363 = vdwg.mxu0
    %1364 = vmatpush.bf16.msra.mxu0 0
    %1365 = vmatpush.bf16.msra.mxu0 0
    %1366 = vmatpush.bf16.msra.mxu0 0
    %1367 = vmatpush.bf16.msra.mxu0 %v1104
    %1368 = vmatpush.bf16.msra.mxu0 %v1092
    %1369 = vmatpush.bf16.msra.mxu0 %v1080
    %1370 = vmatpush.bf16.msra.mxu0 %v1068
    %1371 = vmatpush.bf16.msra.mxu0 %v1056
    %1372 = vmatmul.bf16.gmra.mxu0 %v1271
    %v1373 = vpop.f32.mrf.mxu0
    %v1374 = vadd.f32 %v1361, %v1373
    %v1375 = vpop.f32.mrf.mxu0
    %1376 = vdwg.mxu0
    %1377 = vmatpush.bf16.msra.mxu0 %v1045
    %1378 = vmatpush.bf16.msra.mxu0 %v1033
    %1379 = vmatpush.bf16.msra.mxu0 %v1021
    %1380 = vmatpush.bf16.msra.mxu0 %v1009
    %1381 = vmatpush.bf16.msra.mxu0 %v997
    %1382 = vmatpush.bf16.msra.mxu0 %v985
    %1383 = vmatpush.bf16.msra.mxu0 %v973
    %1384 = vmatpush.bf16.msra.mxu0 %v961
    %1385 = vmatmul.bf16.gmra.mxu0 %v46
    %v1386 = vpop.f32.mrf.mxu0
    %v1387 = vadd.f32 0.0, %v1386
    %v1388 = vpop.f32.mrf.mxu0
    %1389 = vdwg.mxu0
    %1390 = vmatpush.bf16.msra.mxu0 0
    %1391 = vmatpush.bf16.msra.mxu0 0
    %1392 = vmatpush.bf16.msra.mxu0 0
    %1393 = vmatpush.bf16.msra.mxu0 %v1105
    %1394 = vmatpush.bf16.msra.mxu0 %v1093
    %1395 = vmatpush.bf16.msra.mxu0 %v1081
    %1396 = vmatpush.bf16.msra.mxu0 %v1069
    %1397 = vmatpush.bf16.msra.mxu0 %v1057
    %1398 = vmatmul.bf16.gmra.mxu0 %v1271
    %v1399 = vpop.f32.mrf.mxu0
    %v1400 = vadd.f32 %v1387, %v1399
    %v1401 = vpop.f32.mrf.mxu0
    %1402 = vdwg.mxu0
    %1403 = vmatpush.bf16.msra.mxu0 %v1046
    %1404 = vmatpush.bf16.msra.mxu0 %v1034
    %1405 = vmatpush.bf16.msra.mxu0 %v1022
    %1406 = vmatpush.bf16.msra.mxu0 %v1010
    %1407 = vmatpush.bf16.msra.mxu0 %v998
    %1408 = vmatpush.bf16.msra.mxu0 %v986
    %1409 = vmatpush.bf16.msra.mxu0 %v974
    %1410 = vmatpush.bf16.msra.mxu0 %v962
    %1411 = vmatmul.bf16.gmra.mxu0 %v46
    %v1412 = vpop.f32.mrf.mxu0
    %v1413 = vadd.f32 0.0, %v1412
    %v1414 = vpop.f32.mrf.mxu0
    %1415 = vdwg.mxu0
    %1416 = vmatpush.bf16.msra.mxu0 0
    %1417 = vmatpush.bf16.msra.mxu0 0
    %1418 = vmatpush.bf16.msra.mxu0 0
    %1419 = vmatpush.bf16.msra.mxu0 %v1106
    %1420 = vmatpush.bf16.msra.mxu0 %v1094
    %1421 = vmatpush.bf16.msra.mxu0 %v1082
    %1422 = vmatpush.bf16.msra.mxu0 %v1070
    %1423 = vmatpush.bf16.msra.mxu0 %v1058
    %1424 = vmatmul.bf16.gmra.mxu0 %v1271
    %v1425 = vpop.f32.mrf.mxu0
    %v1426 = vadd.f32 %v1413, %v1425
    %v1427 = vpop.f32.mrf.mxu0
    %1428 = vdwg.mxu0
    %1429 = vmatpush.bf16.msra.mxu0 %v1047
    %1430 = vmatpush.bf16.msra.mxu0 %v1035
    %1431 = vmatpush.bf16.msra.mxu0 %v1023
    %1432 = vmatpush.bf16.msra.mxu0 %v1011
    %1433 = vmatpush.bf16.msra.mxu0 %v999
    %1434 = vmatpush.bf16.msra.mxu0 %v987
    %1435 = vmatpush.bf16.msra.mxu0 %v975
    %1436 = vmatpush.bf16.msra.mxu0 %v963
    %1437 = vmatmul.bf16.gmra.mxu0 %v46
    %v1438 = vpop.f32.mrf.mxu0
    %v1439 = vadd.f32 0.0, %v1438
    %v1440 = vpop.f32.mrf.mxu0
    %1441 = vdwg.mxu0
    %1442 = vmatpush.bf16.msra.mxu0 0
    %1443 = vmatpush.bf16.msra.mxu0 0
    %1444 = vmatpush.bf16.msra.mxu0 0
    %1445 = vmatpush.bf16.msra.mxu0 %v1107
    %1446 = vmatpush.bf16.msra.mxu0 %v1095
    %1447 = vmatpush.bf16.msra.mxu0 %v1083
    %1448 = vmatpush.bf16.msra.mxu0 %v1071
    %1449 = vmatpush.bf16.msra.mxu0 %v1059
    %1450 = vmatmul.bf16.gmra.mxu0 %v1271
    %v1451 = vpop.f32.mrf.mxu0
    %v1452 = vadd.f32 %v1439, %v1451
    %v1453 = vpop.f32.mrf.mxu0
    %1454 = vdwg.mxu0
    %1455 = vmatpush.bf16.msra.mxu0 %v1048
    %1456 = vmatpush.bf16.msra.mxu0 %v1036
    %1457 = vmatpush.bf16.msra.mxu0 %v1024
    %1458 = vmatpush.bf16.msra.mxu0 %v1012
    %1459 = vmatpush.bf16.msra.mxu0 %v1000
    %1460 = vmatpush.bf16.msra.mxu0 %v988
    %1461 = vmatpush.bf16.msra.mxu0 %v976
    %1462 = vmatpush.bf16.msra.mxu0 %v964
    %1463 = vmatmul.bf16.gmra.mxu0 %v46
    %v1464 = vpop.f32.mrf.mxu0
    %v1465 = vadd.f32 0.0, %v1464
    %v1466 = vpop.f32.mrf.mxu0
    %1467 = vdwg.mxu0
    %1468 = vmatpush.bf16.msra.mxu0 0
    %1469 = vmatpush.bf16.msra.mxu0 0
    %1470 = vmatpush.bf16.msra.mxu0 0
    %1471 = vmatpush.bf16.msra.mxu0 %v1108
    %1472 = vmatpush.bf16.msra.mxu0 %v1096
    %1473 = vmatpush.bf16.msra.mxu0 %v1084
    %1474 = vmatpush.bf16.msra.mxu0 %v1072
    %1475 = vmatpush.bf16.msra.mxu0 %v1060
    %1476 = vmatmul.bf16.gmra.mxu0 %v1271
    %v1477 = vpop.f32.mrf.mxu0
    %v1478 = vadd.f32 %v1465, %v1477
    %v1479 = vpop.f32.mrf.mxu0
    %1480 = vdwg.mxu0
    %1481 = vmatpush.bf16.msra.mxu0 %v1049
    %1482 = vmatpush.bf16.msra.mxu0 %v1037
    %1483 = vmatpush.bf16.msra.mxu0 %v1025
    %1484 = vmatpush.bf16.msra.mxu0 %v1013
    %1485 = vmatpush.bf16.msra.mxu0 %v1001
    %1486 = vmatpush.bf16.msra.mxu0 %v989
    %1487 = vmatpush.bf16.msra.mxu0 %v977
    %1488 = vmatpush.bf16.msra.mxu0 %v965
    %1489 = vmatmul.bf16.gmra.mxu0 %v46
    %v1490 = vpop.f32.mrf.mxu0
    %v1491 = vadd.f32 0.0, %v1490
    %v1492 = vpop.f32.mrf.mxu0
    %1493 = vdwg.mxu0
    %1494 = vmatpush.bf16.msra.mxu0 0
    %1495 = vmatpush.bf16.msra.mxu0 0
    %1496 = vmatpush.bf16.msra.mxu0 0
    %1497 = vmatpush.bf16.msra.mxu0 %v1109
    %1498 = vmatpush.bf16.msra.mxu0 %v1097
    %1499 = vmatpush.bf16.msra.mxu0 %v1085
    %1500 = vmatpush.bf16.msra.mxu0 %v1073
    %1501 = vmatpush.bf16.msra.mxu0 %v1061
    %1502 = vmatmul.bf16.gmra.mxu0 %v1271
    %v1503 = vpop.f32.mrf.mxu0
    %v1504 = vadd.f32 %v1491, %v1503
    %v1505 = vpop.f32.mrf.mxu0
    %1506 = vdwg.mxu0
    %1507 = vmatpush.bf16.msra.mxu0 %v1050
    %1508 = vmatpush.bf16.msra.mxu0 %v1038
    %1509 = vmatpush.bf16.msra.mxu0 %v1026
    %1510 = vmatpush.bf16.msra.mxu0 %v1014
    %1511 = vmatpush.bf16.msra.mxu0 %v1002
    %1512 = vmatpush.bf16.msra.mxu0 %v990
    %1513 = vmatpush.bf16.msra.mxu0 %v978
    %1514 = vmatpush.bf16.msra.mxu0 %v966
    %1515 = vmatmul.bf16.gmra.mxu0 %v46
    %v1516 = vpop.f32.mrf.mxu0
    %v1517 = vadd.f32 0.0, %v1516
    %v1518 = vpop.f32.mrf.mxu0
    %1519 = vdwg.mxu0
    %1520 = vmatpush.bf16.msra.mxu0 0
    %1521 = vmatpush.bf16.msra.mxu0 0
    %1522 = vmatpush.bf16.msra.mxu0 0
    %1523 = vmatpush.bf16.msra.mxu0 %v1110
    %1524 = vmatpush.bf16.msra.mxu0 %v1098
    %1525 = vmatpush.bf16.msra.mxu0 %v1086
    %1526 = vmatpush.bf16.msra.mxu0 %v1074
    %1527 = vmatpush.bf16.msra.mxu0 %v1062
    %1528 = vmatmul.bf16.gmra.mxu0 %v1271
    %v1529 = vpop.f32.mrf.mxu0
    %v1530 = vadd.f32 %v1517, %v1529
    %v1531 = vpop.f32.mrf.mxu0
    %1532 = vdwg.mxu0
    %1533 = vmatpush.bf16.msra.mxu0 %v1051
    %1534 = vmatpush.bf16.msra.mxu0 %v1039
    %1535 = vmatpush.bf16.msra.mxu0 %v1027
    %1536 = vmatpush.bf16.msra.mxu0 %v1015
    %1537 = vmatpush.bf16.msra.mxu0 %v1003
    %1538 = vmatpush.bf16.msra.mxu0 %v991
    %1539 = vmatpush.bf16.msra.mxu0 %v979
    %1540 = vmatpush.bf16.msra.mxu0 %v967
    %1541 = vmatmul.bf16.gmra.mxu0 %v46
    %v1542 = vpop.f32.mrf.mxu0
    %v1543 = vadd.f32 0.0, %v1542
    %v1544 = vpop.f32.mrf.mxu0
    %1545 = vdwg.mxu0
    %1546 = vmatpush.bf16.msra.mxu0 0
    %1547 = vmatpush.bf16.msra.mxu0 0
    %1548 = vmatpush.bf16.msra.mxu0 0
    %1549 = vmatpush.bf16.msra.mxu0 %v1111
    %1550 = vmatpush.bf16.msra.mxu0 %v1099
    %1551 = vmatpush.bf16.msra.mxu0 %v1087
    %1552 = vmatpush.bf16.msra.mxu0 %v1075
    %1553 = vmatpush.bf16.msra.mxu0 %v1063
    %1554 = vmatmul.bf16.gmra.mxu0 %v1271
    %v1555 = vpop.f32.mrf.mxu0
    %v1556 = vadd.f32 %v1543, %v1555
    %v1557 = vpop.f32.mrf.mxu0
    %1558 = vdwg.mxu0
    %1559 = vmatpush.bf16.msra.mxu0 %v1052
    %1560 = vmatpush.bf16.msra.mxu0 %v1040
    %1561 = vmatpush.bf16.msra.mxu0 %v1028
    %1562 = vmatpush.bf16.msra.mxu0 %v1016
    %1563 = vmatpush.bf16.msra.mxu0 %v1004
    %1564 = vmatpush.bf16.msra.mxu0 %v992
    %1565 = vmatpush.bf16.msra.mxu0 %v980
    %1566 = vmatpush.bf16.msra.mxu0 %v968
    %1567 = vmatmul.bf16.gmra.mxu0 %v46
    %v1568 = vpop.f32.mrf.mxu0
    %v1569 = vadd.f32 0.0, %v1568
    %v1570 = vpop.f32.mrf.mxu0
    %1571 = vdwg.mxu0
    %1572 = vmatpush.bf16.msra.mxu0 0
    %1573 = vmatpush.bf16.msra.mxu0 0
    %1574 = vmatpush.bf16.msra.mxu0 0
    %1575 = vmatpush.bf16.msra.mxu0 %v1112
    %1576 = vmatpush.bf16.msra.mxu0 %v1100
    %1577 = vmatpush.bf16.msra.mxu0 %v1088
    %1578 = vmatpush.bf16.msra.mxu0 %v1076
    %1579 = vmatpush.bf16.msra.mxu0 %v1064
    %1580 = vmatmul.bf16.gmra.mxu0 %v1271
    %v1581 = vpop.f32.mrf.mxu0
    %v1582 = vadd.f32 %v1569, %v1581
    %v1583 = vpop.f32.mrf.mxu0
    %1584 = vdwg.mxu0
    %v1585 = vadd.f32 %v187, %v1296
    %v1586 = vadd.f32 %v200, %v1322
    %v1587 = vadd.f32 %v213, %v1348
    %v1588 = vadd.f32 %v226, %v1374
    %v1589 = vadd.f32 %v239, %v1400
    %v1590 = vadd.f32 %v252, %v1426
    %v1591 = vadd.f32 %v265, %v1452
    %v1592 = vadd.f32 %v278, %v1478
    %v1593 = vadd.f32 %v291, %v1504
    %v1594 = vadd.f32 %v304, %v1530
    %v1595 = vadd.f32 %v317, %v1556
    %v1596 = vadd.f32 %v330, %v1582
    %1597 = vst [vmem:[%s6] sm:$0xff] %v1585
    %1598 = vst [vmem:[%s6 + $0x8] sm:$0xff] %v1586
    %1599 = vst [vmem:[%s6 + $0x10] sm:$0xff] %v1587
    %1600 = vst [vmem:[%s6 + $0x18] sm:$0xff] %v1588
    %1601 = vst [vmem:[%s6 + $0x20] sm:$0xff] %v1589
    %1602 = vst [vmem:[%s6 + $0x28] sm:$0xff] %v1590
    %1603 = vst [vmem:[%s6 + $0x30] sm:$0xff] %v1591
    %1604 = vst [vmem:[%s6 + $0x38] sm:$0xff] %v1592
    %1605 = vst [vmem:[%s6 + $0x40] sm:$0xff] %v1593
    %1606 = vst [vmem:[%s6 + $0x48] sm:$0xff] %v1594
    %1607 = vst [vmem:[%s6 + $0x50] sm:$0xff] %v1595
    %1608 = vst [vmem:[%s6 + $0x58] sm:$0xff] %v1596
    %v1609 = vpack.c.bf16 %v200, %v187
    %v1610 = vpack.c.bf16 %v226, %v213
    %v1611 = vpack.c.bf16 %v252, %v239
    %v1612 = vpack.c.bf16 %v278, %v265
    %v1613 = vpack.c.bf16 %v304, %v291
    %v1614 = vpack.c.bf16 %v330, %v317
    %v1617 = vunpack.c.l.b16 %v1609
    %v1618 = vunpack.c.h.b16 %v1609
    %v1619 = vunpack.c.l.b16 %v1610
    %v1620 = vunpack.c.h.b16 %v1610
    %v1621 = vpack.c.b16 %v1617, %v1617
    %v1622 = vpack.c.b16 %v1618, %v1618
    %v1623 = vpack.c.b16 %v1619, %v1619
    %v1624 = vpack.c.b16 %v1620, %v1620
    %v1627 = vunpack.c.l.b16 %v1611
    %v1628 = vunpack.c.h.b16 %v1611
    %v1629 = vunpack.c.l.b16 %v1612
    %v1630 = vunpack.c.h.b16 %v1612
    %v1631 = vpack.c.b16 %v1627, %v1627
    %v1632 = vpack.c.b16 %v1628, %v1628
    %v1633 = vpack.c.b16 %v1629, %v1629
    %v1634 = vpack.c.b16 %v1630, %v1630
    %v1637 = vunpack.c.l.b16 %v1613
    %v1638 = vunpack.c.h.b16 %v1613
    %v1639 = vunpack.c.l.b16 %v1614
    %v1640 = vunpack.c.h.b16 %v1614
    %v1641 = vpack.c.b16 %v1637, %v1637
    %v1642 = vpack.c.b16 %v1638, %v1638
    %v1643 = vpack.c.b16 %v1639, %v1639
    %v1644 = vpack.c.b16 %v1640, %v1640
    %vm1649 = vcmask 1043456
    %v1652 = vsel %vm1649, %v1621, %v1631
    %v1656 = vsel %vm1649, %v1622, %v1632
    %v1660 = vsel %vm1649, %v1623, %v1633
    %v1664 = vsel %vm1649, %v1624, %v1634
    %v1666 = vld [vmem:[%s5] sm:$0xf]
    %v1667 = vld [vmem:[%s5 + $0x4] sm:$0xf]
    %v1668 = vld [vmem:[%s5 + $0x8] sm:$0xf]
    %v1669 = vld [vmem:[%s5 + $0xc] sm:$0xf]
    %v1670 = vld [vmem:[%s5 + $0x10] sm:$0xf]
    %v1671 = vld [vmem:[%s5 + $0x14] sm:$0xf]
    %v1672 = vld [vmem:[%s5 + $0x18] sm:$0xf]
    %v1673 = vld [vmem:[%s5 + $0x1c] sm:$0xf]
    %v1674 = vld [vmem:[%s5 + $0x20] sm:$0xf]
    %v1675 = vld [vmem:[%s5 + $0x24] sm:$0xf]
    %v1676 = vld [vmem:[%s5 + $0x28] sm:$0xf]
    %v1677 = vld [vmem:[%s5 + $0x2c] sm:$0xf]
    %v1678 = vld [vmem:[%s5 + $0x30] sm:$0xf]
    %v1679 = vld [vmem:[%s5 + $0x34] sm:$0xf]
    %v1680 = vld [vmem:[%s5 + $0x38] sm:$0xf]
    %v1681 = vld [vmem:[%s5 + $0x3c] sm:$0xf]
    %v1682 = vld [vmem:[%s5 + $0x40] sm:$0xf]
    %v1683 = vld [vmem:[%s5 + $0x44] sm:$0xf]
    %v1684 = vld [vmem:[%s5 + $0x48] sm:$0xf]
    %v1685 = vld [vmem:[%s5 + $0x4c] sm:$0xf]
    %v1686 = vld [vmem:[%s5 + $0x50] sm:$0xf]
    %v1687 = vld [vmem:[%s5 + $0x54] sm:$0xf]
    %v1688 = vld [vmem:[%s5 + $0x58] sm:$0xf]
    %v1689 = vld [vmem:[%s5 + $0x5c] sm:$0xf]
    %v1690 = vld [vmem:[%s5 + $0x60] sm:$0xf]
    %v1691 = vld [vmem:[%s5 + $0x64] sm:$0xf]
    %v1692 = vld [vmem:[%s5 + $0x68] sm:$0xf]
    %v1693 = vld [vmem:[%s5 + $0x6c] sm:$0xf]
    %v1694 = vld [vmem:[%s5 + $0x70] sm:$0xf]
    %v1695 = vld [vmem:[%s5 + $0x74] sm:$0xf]
    %v1696 = vld [vmem:[%s5 + $0x78] sm:$0xf]
    %v1697 = vld [vmem:[%s5 + $0x7c] sm:$0xf]
    %v1698 = vld [vmem:[%s5 + $0x80] sm:$0xf]
    %v1699 = vld [vmem:[%s5 + $0x84] sm:$0xf]
    %v1700 = vld [vmem:[%s5 + $0x88] sm:$0xf]
    %v1701 = vld [vmem:[%s5 + $0x8c] sm:$0xf]
    %v1702 = vld [vmem:[%s5 + $0x90] sm:$0xf]
    %v1703 = vld [vmem:[%s5 + $0x94] sm:$0xf]
    %v1704 = vld [vmem:[%s5 + $0x98] sm:$0xf]
    %v1705 = vld [vmem:[%s5 + $0x9c] sm:$0xf]
    %v1706 = vld [vmem:[%s5 + $0xa0] sm:$0xf]
    %v1707 = vld [vmem:[%s5 + $0xa4] sm:$0xf]
    %v1708 = vld [vmem:[%s5 + $0xa8] sm:$0xf]
    %v1709 = vld [vmem:[%s5 + $0xac] sm:$0xf]
    %v1710 = vld [vmem:[%s5 + $0xb0] sm:$0xf]
    %v1711 = vld [vmem:[%s5 + $0xb4] sm:$0xf]
    %v1712 = vld [vmem:[%s5 + $0xb8] sm:$0xf]
    %v1713 = vld [vmem:[%s5 + $0xbc] sm:$0xf]
    %v1714 = vld [vmem:[%s5 + $0xc0] sm:$0xf]
    %v1715 = vld [vmem:[%s5 + $0xc4] sm:$0xf]
    %v1716 = vld [vmem:[%s5 + $0xc8] sm:$0xf]
    %v1717 = vld [vmem:[%s5 + $0xcc] sm:$0xf]
    %v1718 = vld [vmem:[%s5 + $0xd0] sm:$0xf]
    %v1719 = vld [vmem:[%s5 + $0xd4] sm:$0xf]
    %v1720 = vld [vmem:[%s5 + $0xd8] sm:$0xf]
    %v1721 = vld [vmem:[%s5 + $0xdc] sm:$0xf]
    %v1722 = vld [vmem:[%s5 + $0xe0] sm:$0xf]
    %v1723 = vld [vmem:[%s5 + $0xe4] sm:$0xf]
    %v1724 = vld [vmem:[%s5 + $0xe8] sm:$0xf]
    %v1725 = vld [vmem:[%s5 + $0xec] sm:$0xf]
    %v1726 = vld [vmem:[%s5 + $0xf0] sm:$0xf]
    %v1727 = vld [vmem:[%s5 + $0xf4] sm:$0xf]
    %v1728 = vld [vmem:[%s5 + $0xf8] sm:$0xf]
    %v1729 = vld [vmem:[%s5 + $0xfc] sm:$0xf]
    %v1794 = vunpack.c.l.b16 %v1666
    %v1795 = vunpack.c.l.b16 %v1667
    %v1796 = vunpack.c.l.b16 %v1668
    %v1797 = vunpack.c.l.b16 %v1669
    %v1798 = vunpack.c.l.b16 %v1670
    %v1799 = vunpack.c.l.b16 %v1671
    %v1800 = vunpack.c.l.b16 %v1672
    %v1801 = vunpack.c.l.b16 %v1673
    %v1802 = vunpack.c.l.b16 %v1674
    %v1803 = vunpack.c.l.b16 %v1675
    %v1804 = vunpack.c.l.b16 %v1676
    %v1805 = vunpack.c.l.b16 %v1677
    %v1806 = vunpack.c.l.b16 %v1678
    %v1807 = vunpack.c.l.b16 %v1679
    %v1808 = vunpack.c.l.b16 %v1680
    %v1809 = vunpack.c.l.b16 %v1681
    %v1810 = vunpack.c.l.b16 %v1682
    %v1811 = vunpack.c.l.b16 %v1683
    %v1812 = vunpack.c.l.b16 %v1684
    %v1813 = vunpack.c.l.b16 %v1685
    %v1814 = vunpack.c.l.b16 %v1686
    %v1815 = vunpack.c.l.b16 %v1687
    %v1816 = vunpack.c.l.b16 %v1688
    %v1817 = vunpack.c.l.b16 %v1689
    %v1818 = vunpack.c.l.b16 %v1690
    %v1819 = vunpack.c.l.b16 %v1691
    %v1820 = vunpack.c.l.b16 %v1692
    %v1821 = vunpack.c.l.b16 %v1693
    %v1822 = vunpack.c.l.b16 %v1694
    %v1823 = vunpack.c.l.b16 %v1695
    %v1824 = vunpack.c.l.b16 %v1696
    %v1825 = vunpack.c.l.b16 %v1697
    %v1826 = vunpack.c.l.b16 %v1698
    %v1827 = vunpack.c.l.b16 %v1699
    %v1828 = vunpack.c.l.b16 %v1700
    %v1829 = vunpack.c.l.b16 %v1701
    %v1830 = vunpack.c.l.b16 %v1702
    %v1831 = vunpack.c.l.b16 %v1703
    %v1832 = vunpack.c.l.b16 %v1704
    %v1833 = vunpack.c.l.b16 %v1705
    %v1834 = vunpack.c.l.b16 %v1706
    %v1835 = vunpack.c.l.b16 %v1707
    %v1836 = vunpack.c.l.b16 %v1708
    %v1837 = vunpack.c.l.b16 %v1709
    %v1838 = vunpack.c.l.b16 %v1710
    %v1839 = vunpack.c.l.b16 %v1711
    %v1840 = vunpack.c.l.b16 %v1712
    %v1841 = vunpack.c.l.b16 %v1713
    %v1842 = vunpack.c.l.b16 %v1714
    %v1843 = vunpack.c.l.b16 %v1715
    %v1844 = vunpack.c.l.b16 %v1716
    %v1845 = vunpack.c.l.b16 %v1717
    %v1846 = vunpack.c.l.b16 %v1718
    %v1847 = vunpack.c.l.b16 %v1719
    %v1848 = vunpack.c.l.b16 %v1720
    %v1849 = vunpack.c.l.b16 %v1721
    %v1850 = vunpack.c.l.b16 %v1722
    %v1851 = vunpack.c.l.b16 %v1723
    %v1852 = vunpack.c.l.b16 %v1724
    %v1853 = vunpack.c.l.b16 %v1725
    %v1854 = vunpack.c.l.b16 %v1726
    %v1855 = vunpack.c.l.b16 %v1727
    %v1856 = vunpack.c.l.b16 %v1728
    %v1857 = vunpack.c.l.b16 %v1729
    %v1858 = vpack.c.b16 %v1795, %v1794
    %v1859 = vpack.c.b16 %v1797, %v1796
    %v1860 = vpack.c.b16 %v1799, %v1798
    %v1861 = vpack.c.b16 %v1801, %v1800
    %v1862 = vpack.c.b16 %v1803, %v1802
    %v1863 = vpack.c.b16 %v1805, %v1804
    %v1864 = vpack.c.b16 %v1807, %v1806
    %v1865 = vpack.c.b16 %v1809, %v1808
    %v1866 = vpack.c.b16 %v1811, %v1810
    %v1867 = vpack.c.b16 %v1813, %v1812
    %v1868 = vpack.c.b16 %v1815, %v1814
    %v1869 = vpack.c.b16 %v1817, %v1816
    %v1870 = vpack.c.b16 %v1819, %v1818
    %v1871 = vpack.c.b16 %v1821, %v1820
    %v1872 = vpack.c.b16 %v1823, %v1822
    %v1873 = vpack.c.b16 %v1825, %v1824
    %v1874 = vpack.c.b16 %v1827, %v1826
    %v1875 = vpack.c.b16 %v1829, %v1828
    %v1876 = vpack.c.b16 %v1831, %v1830
    %v1877 = vpack.c.b16 %v1833, %v1832
    %v1878 = vpack.c.b16 %v1835, %v1834
    %v1879 = vpack.c.b16 %v1837, %v1836
    %v1880 = vpack.c.b16 %v1839, %v1838
    %v1881 = vpack.c.b16 %v1841, %v1840
    %v1882 = vpack.c.b16 %v1843, %v1842
    %v1883 = vpack.c.b16 %v1845, %v1844
    %v1884 = vpack.c.b16 %v1847, %v1846
    %v1885 = vpack.c.b16 %v1849, %v1848
    %v1886 = vpack.c.b16 %v1851, %v1850
    %v1887 = vpack.c.b16 %v1853, %v1852
    %v1888 = vpack.c.b16 %v1855, %v1854
    %v1889 = vpack.c.b16 %v1857, %v1856
    %1922 = vmatpush.bf16.msra.mxu0 %v1865
    %1923 = vmatpush.bf16.msra.mxu0 %v1864
    %1924 = vmatpush.bf16.msra.mxu0 %v1863
    %1925 = vmatpush.bf16.msra.mxu0 %v1862
    %1926 = vmatpush.bf16.msra.mxu0 %v1861
    %1927 = vmatpush.bf16.msra.mxu0 %v1860
    %1928 = vmatpush.bf16.msra.mxu0 %v1859
    %1929 = vmatpush.bf16.msra.mxu0 %v1858
    %1930 = vmatmul.bf16.gmra.mxu0 %v1652
    %v1931 = vpop.f32.mrf.mxu0
    %v1932 = vadd.f32 0.0, %v1931
    %v1933 = vpop.f32.mrf.mxu0
    %v1934 = vadd.f32 0.0, %v1933
    %1935 = vmatmul.bf16.gmra.mxu0 %v1641
    %v1936 = vpop.f32.mrf.mxu0
    %v1937 = vadd.f32 0.0, %v1936
    %v1938 = vpop.f32.mrf.mxu0
    %1939 = vdwg.mxu0
    %1940 = vmatpush.bf16.msra.mxu0 %v1873
    %1941 = vmatpush.bf16.msra.mxu0 %v1872
    %1942 = vmatpush.bf16.msra.mxu0 %v1871
    %1943 = vmatpush.bf16.msra.mxu0 %v1870
    %1944 = vmatpush.bf16.msra.mxu0 %v1869
    %1945 = vmatpush.bf16.msra.mxu0 %v1868
    %1946 = vmatpush.bf16.msra.mxu0 %v1867
    %1947 = vmatpush.bf16.msra.mxu0 %v1866
    %1948 = vmatmul.bf16.gmra.mxu0 %v1656
    %v1949 = vpop.f32.mrf.mxu0
    %v1950 = vadd.f32 %v1932, %v1949
    %v1951 = vpop.f32.mrf.mxu0
    %v1952 = vadd.f32 %v1934, %v1951
    %1953 = vmatmul.bf16.gmra.mxu0 %v1642
    %v1954 = vpop.f32.mrf.mxu0
    %v1955 = vadd.f32 %v1937, %v1954
    %v1956 = vpop.f32.mrf.mxu0
    %1957 = vdwg.mxu0
    %1958 = vmatpush.bf16.msra.mxu0 %v1881
    %1959 = vmatpush.bf16.msra.mxu0 %v1880
    %1960 = vmatpush.bf16.msra.mxu0 %v1879
    %1961 = vmatpush.bf16.msra.mxu0 %v1878
    %1962 = vmatpush.bf16.msra.mxu0 %v1877
    %1963 = vmatpush.bf16.msra.mxu0 %v1876
    %1964 = vmatpush.bf16.msra.mxu0 %v1875
    %1965 = vmatpush.bf16.msra.mxu0 %v1874
    %1966 = vmatmul.bf16.gmra.mxu0 %v1660
    %v1967 = vpop.f32.mrf.mxu0
    %v1968 = vadd.f32 %v1950, %v1967
    %v1969 = vpop.f32.mrf.mxu0
    %v1970 = vadd.f32 %v1952, %v1969
    %1971 = vmatmul.bf16.gmra.mxu0 %v1643
    %v1972 = vpop.f32.mrf.mxu0
    %v1973 = vadd.f32 %v1955, %v1972
    %v1974 = vpop.f32.mrf.mxu0
    %1975 = vdwg.mxu0
    %1976 = vmatpush.bf16.msra.mxu0 %v1889
    %1977 = vmatpush.bf16.msra.mxu0 %v1888
    %1978 = vmatpush.bf16.msra.mxu0 %v1887
    %1979 = vmatpush.bf16.msra.mxu0 %v1886
    %1980 = vmatpush.bf16.msra.mxu0 %v1885
    %1981 = vmatpush.bf16.msra.mxu0 %v1884
    %1982 = vmatpush.bf16.msra.mxu0 %v1883
    %1983 = vmatpush.bf16.msra.mxu0 %v1882
    %1984 = vmatmul.bf16.gmra.mxu0 %v1664
    %v1985 = vpop.f32.mrf.mxu0
    %v1986 = vadd.f32 %v1968, %v1985
    %v1987 = vpop.f32.mrf.mxu0
    %v1988 = vadd.f32 %v1970, %v1987
    %1989 = vmatmul.bf16.gmra.mxu0 %v1644
    %v1990 = vpop.f32.mrf.mxu0
    %v1991 = vadd.f32 %v1973, %v1990
    %v1992 = vpop.f32.mrf.mxu0
    %1993 = vdwg.mxu0
    %1994 = vst [vmem:[%s7] sm:$0xff] %v1986
    %1995 = vst [vmem:[%s7 + $0x8] sm:$0xff] %v1988
    %1996 = vst [vmem:[%s7 + $0x10] sm:$0xff] %v1991
    // Predicated region
    $region30: #{_lambda_.2} parent=1 // pred_check
      _
    $region31: #{_lambda_.2} parent=1 // pred_check_branch
      %1998 = sbr.rel (0) target = $region33
    $region32: #{_lambda_.2} parent=1 // pred_region
      _
    $region33: #{_lambda_.2} parent=1 // pred_fallthru
      _
    // Predicated region
    $region34: #{_lambda_.2} parent=1 // pred_check
      _
    $region35: #{_lambda_.2} parent=1 // pred_check_branch
      %2000 = sbr.rel (0) target = $region37
    $region36: #{_lambda_.2} parent=1 // pred_region
      _
    $region37: #{_lambda_.2} parent=1 // pred_fallthru
      _
    // Predicated region
    $region38: #{_lambda_.2} parent=1 // pred_check
      _
    $region39: #{_lambda_.2} parent=1 // pred_check_branch
      %2002 = sbr.rel (0) target = $region41
    $region40: #{_lambda_.2} parent=1 // pred_region
      _
    $region41: #{_lambda_.2} parent=1 // pred_fallthru
      _
    // Predicated region
    $region42: #{_lambda_.2} parent=1 // pred_check
      _
    $region43: #{_lambda_.2} parent=1 // pred_check_branch
      %2004 = sbr.rel (0) target = $region45
    $region44: #{_lambda_.2} parent=1 // pred_region
      _
    $region45: #{_lambda_.2} parent=1 // pred_fallthru
      _
    %2005 = vsyncpa [#allocation3], 1

</llo_original>
